<compile_context>
chip_gen: v5e
topology: v5e:2x2
jax: 0.10.0
libtpu: 0.0.40
codegen_flags: <defaults>
</compile_context>

<pallas_src>
import functools

import jax
import jax.numpy as jnp
from jax.experimental import pallas as pl
from jax.experimental.pallas import tpu as pltpu

_NEG_LARGE = -3.0e38  # max-pool identity (finite, avoids inf/nan)


def _round_up(x, m):
    return (x + m - 1) // m * m


def _detect_vmem_limit():
    # ~80% of physical VMEM: v5e/v6e (128 MiB) -> ~102 MiB, v7x (64 MiB) ->
    # ~51 MiB. Conservative 48 MiB fallback if the query is unavailable.
    try:
        info = pltpu.get_tpu_info()
        cap = int(getattr(info, "vmem_capacity_bytes", 0) or 0)
        if cap <= 0:
            raise ValueError("no vmem capacity reported")
        return min(int(cap * 0.8), 112 * 1024 * 1024)
    except Exception:  # pragma: no cover - defensive fallback
        return 48 * 1024 * 1024


_VMEM_LIMIT = _detect_vmem_limit()
# Budget for keeping Z fully resident in the aggregation kernel (leave
# headroom for A tiles, the output double buffer and the f32 accumulator).
_Z_RESIDENT_BUDGET = max(_VMEM_LIMIT - 16 * 1024 * 1024, 8 * 1024 * 1024)


def _cparams(semantics):
    return pltpu.CompilerParams(dimension_semantics=semantics,
                                vmem_limit_bytes=_VMEM_LIMIT)


def _padded_size(n):
    # Pad so 512-wide tiles divide the node count once the graph is big
    # enough for the tile win to matter; tiny graphs stay at 128 alignment.
    return _round_up(n, 512) if n >= 512 else _round_up(n, 128)


def _pick_tile(n_pad):
    for t in (512, 256, 128):
        if n_pad % t == 0:
            return t
    return n_pad


# ---------------------------------------------------------------------------
# Kernel 1: tiled neighborhood aggregation   out = [relu](A_norm @ Z + b)
#   grid = (row tiles, k tiles); A blocked (tm, tk); Z either VMEM-resident
#   (whole array, DMA'd once) or streamed (tk, C) per step; f32 accumulator
#   scratch; bias + ReLU fused into the finalize.
# ---------------------------------------------------------------------------
def _agg_kernel(a_ref, z_ref, b_ref, o_ref, acc_ref, *, apply_relu,
                resident_z, tk):
    k = pl.program_id(1)

    @pl.when(k == 0)
    def _():
        acc_ref[...] = jnp.zeros_like(acc_ref)

    if resident_z:
        off = pl.multiple_of(k * tk, tk)
        z = z_ref[pl.ds(off, tk), :]
    else:
        z = z_ref[...]
    acc_ref[...] += jnp.dot(a_ref[...], z, preferred_element_type=jnp.float32)

    @pl.when(k == pl.num_programs(1) - 1)
    def _():
        acc = acc_ref[...] + b_ref[...]
        if apply_relu:
            acc = jnp.maximum(acc, 0.0)
        o_ref[...] = acc.astype(o_ref.dtype)


def aggregate(a, z, b, *, apply_relu, out_dtype):
    n = a.shape[0]
    c = z.shape[1]
    tm = tk = _pick_tile(n)

    # Z resident (single DMA, reused by every row tile) when it fits VMEM;
    # assume worst-case double buffering when checking the budget.
    resident_z = 2 * n * c * jnp.dtype(z.dtype).itemsize <= _Z_RESIDENT_BUDGET
    if resident_z:
        z_spec = pl.BlockSpec((n, c), lambda i, k: (0, 0))
    else:
        z_spec = pl.BlockSpec((tk, c), lambda i, k: (k, 0))

    kernel = functools.partial(_agg_kernel, apply_relu=apply_relu,
                               resident_z=resident_z, tk=tk)
    # TODO(synk): if the A DMA is still exposed at large N, add
    # pipeline_mode=pl.Buffered(3) on the A BlockSpec and re-sweep.
    return pl.pallas_call(
        kernel,
        out_shape=jax.ShapeDtypeStruct((n, c), out_dtype),
        grid_spec=pltpu.PrefetchScalarGridSpec(
            num_scalar_prefetch=0,
            grid=(n // tm, n // tk),
            in_specs=[
                pl.BlockSpec((tm, tk), lambda i, k: (i, k)),   # A tile
                z_spec,                                        # Z (resident/stream)
                pl.BlockSpec((1, c), lambda i, k: (0, 0)),     # bias
            ],
            out_specs=pl.BlockSpec((tm, c), lambda i, k: (i, 0)),
            scratch_shapes=[pltpu.VMEM((tm, c), jnp.float32)],
        ),
        compiler_params=_cparams(("parallel", "arbitrary")),
    )(a, z, b)


# ---------------------------------------------------------------------------
# Kernel 2: row-tiled dense matmul   out = [relu](X @ W + b)
# ---------------------------------------------------------------------------
def _dense_kernel(x_ref, w_ref, b_ref, o_ref, *, apply_relu):
    acc = jnp.dot(x_ref[...], w_ref[...],
                  preferred_element_type=jnp.float32) + b_ref[...]
    if apply_relu:
        acc = jnp.maximum(acc, 0.0)
    o_ref[...] = acc.astype(o_ref.dtype)


def dense(x, w, b, *, apply_relu, out_dtype):
    n, cin = x.shape
    cout = w.shape[1]
    tm = _pick_tile(n)
    kernel = functools.partial(_dense_kernel, apply_relu=apply_relu)
    return pl.pallas_call(
        kernel,
        out_shape=jax.ShapeDtypeStruct((n, cout), out_dtype),
        grid_spec=pltpu.PrefetchScalarGridSpec(
            num_scalar_prefetch=0,
            grid=(n // tm,),
            in_specs=[
                pl.BlockSpec((tm, cin), lambda i: (i, 0)),
                pl.BlockSpec((cin, cout), lambda i: (0, 0)),
                pl.BlockSpec((1, cout), lambda i: (0, 0)),
            ],
            out_specs=pl.BlockSpec((tm, cout), lambda i: (i, 0)),
        ),
        compiler_params=_cparams(("parallel",)),
    )(x, w, b)


# ---------------------------------------------------------------------------
# Kernel 3: segmented global max pool.
#   Single grid over node tiles; the [G_pad, C] output stays resident across
#   the grid (accumulator pattern), so H is read from HBM exactly once.
# ---------------------------------------------------------------------------
def _pool_kernel(batch_ref, h_ref, o_ref, *, num_graphs):
    @pl.when(pl.program_id(0) == 0)
    def _():
        o_ref[...] = jnp.full(o_ref.shape, _NEG_LARGE, jnp.float32)

    h = h_ref[...].astype(jnp.float32)          # [tn, C]
    b = batch_ref[...]                          # [tn, 1] graph id (-1 = pad)
    rows = []
    # Static loop over graphs (num_graphs is a trace-time constant).
    # TODO(synk): for very large graph counts, switch to a tiled one-hot /
    # segment reduction instead of an unrolled per-graph masked max.
    for g in range(num_graphs):
        m = b == g
        rows.append(jnp.max(jnp.where(m, h, _NEG_LARGE), axis=0,
                            keepdims=True))     # [1, C]
    g_pad = o_ref.shape[0]
    if g_pad > num_graphs:
        rows.append(jnp.full((g_pad - num_graphs, h.shape[1]), _NEG_LARGE,
                             jnp.float32))
    tile_max = jnp.concatenate(rows, axis=0)    # [G_pad, C]
    o_ref[...] = jnp.maximum(o_ref[...], tile_max)


def global_max_pool(batch_col, h, num_graphs):
    n, c = h.shape
    tn = _pick_tile(n)
    g_pad = max(8, _round_up(num_graphs, 8))
    out = pl.pallas_call(
        functools.partial(_pool_kernel, num_graphs=num_graphs),
        out_shape=jax.ShapeDtypeStruct((g_pad, c), jnp.float32),
        grid_spec=pltpu.PrefetchScalarGridSpec(
            num_scalar_prefetch=0,
            grid=(n // tn,),
            in_specs=[
                pl.BlockSpec((tn, 1), lambda k: (k, 0)),   # node graph ids
                pl.BlockSpec((tn, c), lambda k: (k, 0)),   # feature slab
            ],
            out_specs=pl.BlockSpec((g_pad, c), lambda k: (0, 0)),
        ),
        compiler_params=_cparams(("arbitrary",)),
    )(batch_col, h)
    return out[:num_graphs]


# ---------------------------------------------------------------------------
# Kernel 4: tiny MLP head  y = lin3(relu(lin2(relu(lin1(p)))))
# (G is tiny; whole-VMEM kernel. Last-dim-2 output -> masked stores, but the
#  data volume is negligible.)
# ---------------------------------------------------------------------------
def _mlp_head_kernel(p_ref, w1_ref, b1_ref, w2_ref, b2_ref, w3_ref, b3_ref,
                     o_ref):
    h = jnp.dot(p_ref[...], w1_ref[...],
                preferred_element_type=jnp.float32) + b1_ref[...]
    h = jnp.maximum(h, 0.0)
    h = jnp.dot(h, w2_ref[...], preferred_element_type=jnp.float32) + b2_ref[...]
    h = jnp.maximum(h, 0.0)
    o_ref[...] = jnp.dot(h, w3_ref[...],
                         preferred_element_type=jnp.float32) + b3_ref[...]


def mlp_head(pooled, params):
    g = pooled.shape[0]
    def vmem():
        return pl.BlockSpec(memory_space=pltpu.MemorySpace.VMEM)
    return pl.pallas_call(
        _mlp_head_kernel,
        out_shape=jax.ShapeDtypeStruct((g, 2), jnp.float32),
        in_specs=[vmem() for _ in range(7)],
        out_specs=vmem(),
        compiler_params=pltpu.CompilerParams(vmem_limit_bytes=_VMEM_LIMIT),
    )(pooled, params["lin1_w"], params["lin1_b"],
      params["lin2_w"], params["lin2_b"],
      params["lin3_w"], params["lin3_b"])


# ---------------------------------------------------------------------------
# Glue: dense symmetric-normalized adjacency, built padded & fused:
#   deg via segment-sum over the edge list (+1 for self loops), D^-1/2 folded
#   into the edge weights, single scatter into the padded buffer, bf16 cast.
# ---------------------------------------------------------------------------
# TODO(synk): for large sparse graphs, replace the dense N x N adjacency with
# a gather/scatter aggregation (scalar-prefetched neighbor lists) to cut the
# O(N^2) mostly-zero bytes read by the aggregation kernel.
def build_norm_adj_padded(edge_index, edge_weight, num_nodes, n_pad):
    src = edge_index[0]
    dst = edge_index[1]
    deg = jnp.ones((num_nodes,), jnp.float32).at[dst].add(
        edge_weight.astype(jnp.float32))
    dinv = jnp.where(deg > 0.0, jax.lax.rsqrt(deg), 0.0)

    loops = jnp.arange(num_nodes, dtype=src.dtype)
    all_dst = jnp.concatenate([dst, loops])
    all_src = jnp.concatenate([src, loops])
    all_w = jnp.concatenate([edge_weight.astype(jnp.float32),
                             jnp.ones((num_nodes,), jnp.float32)])
    norm_w = dinv[all_dst] * all_w * dinv[all_src]

    a = jnp.zeros((n_pad, n_pad), jnp.float32)
    a = a.at[all_dst, all_src].add(norm_w)      # A_norm[dst, src]
    return a.astype(jnp.bfloat16)


# ---------------------------------------------------------------------------
# Full forward
# ---------------------------------------------------------------------------
@functools.partial(jax.jit, static_argnames=("num_graphs",))
def gcn_forward(params, x, edge_index, edge_weight, batch, num_graphs):
    n = x.shape[0]
    n_pad = _padded_size(n)

    # bf16 adjacency (f32 accumulation inside the kernels), built pre-padded.
    a = build_norm_adj_padded(edge_index, edge_weight, n, n_pad)

    # Node features: pad feature dim 1 -> 8; padded nodes are all-zero and
    # have zero A rows/cols, so they never influence real nodes.
    x_pad = jnp.pad(x.astype(jnp.float32),
                    ((0, n_pad - n), (0, 7))).astype(jnp.bfloat16)

    # Graph id per node; padded nodes get -1 so they never match any graph.
    batch_col = jnp.pad(batch.astype(jnp.int32), (0, n_pad - n),
                        constant_values=-1)[:, None]

    zeros8 = jnp.zeros((1, 8), jnp.float32)
    zeros128 = jnp.zeros((1, 128), jnp.float32)

    # Layer 1, reordered: relu((A @ x) @ W1 + b1)   (C_in << C_out)
    w1_pad = jnp.pad(params["w1"], ((0, 7), (0, 0))).astype(jnp.bfloat16)
    ax = aggregate(a, x_pad, zeros8, apply_relu=False,
                   out_dtype=jnp.bfloat16)                       # [n_pad, 8]
    h = dense(ax, w1_pad, params["b1"], apply_relu=True,
              out_dtype=jnp.bfloat16)                            # [n_pad, 128]

    # Layers 2..5: relu(A @ (H W_i) + b_i)   (C_in == C_out; keep this order)
    for i in range(2, 6):
        z = dense(h, params[f"w{i}"].astype(jnp.bfloat16), zeros128,
                  apply_relu=False, out_dtype=jnp.bfloat16)
        h = aggregate(a, z, params[f"b{i}"], apply_relu=True,
                      out_dtype=jnp.bfloat16)

    pooled = global_max_pool(batch_col, h, num_graphs)           # [G, 128]
    return mlp_head(pooled, params)                              # [G, 2]


# ---------------------------------------------------------------------------
# Parameter initialization (deterministic, synthetic)
# ---------------------------------------------------------------------------
def _glorot(key, shape):
    fan_in, fan_out = shape
    lim = jnp.sqrt(6.0 / (fan_in + fan_out))
    return jax.random.uniform(key, shape, jnp.float32, -lim, lim)


def init_params(key):
    ks = jax.random.split(key, 16)
    p = {}
    conv_dims = [(1, 128), (128, 128), (128, 128), (128, 128), (128, 128)]
    for i, (cin, cout) in enumerate(conv_dims, start=1):
        p[f"w{i}"] = _glorot(ks[2 * i - 2], (cin, cout))
        p[f"b{i}"] = 0.01 * jax.random.normal(ks[2 * i - 1], (1, cout),
                                              jnp.float32)
    p["lin1_w"] = _glorot(ks[10], (128, 64))
    p["lin1_b"] = 0.01 * jax.random.normal(ks[11], (1, 64), jnp.float32)
    p["lin2_w"] = _glorot(ks[12], (64, 16))
    p["lin2_b"] = 0.01 * jax.random.normal(ks[13], (1, 16), jnp.float32)
    p["lin3_w"] = _glorot(ks[14], (16, 2))
    p["lin3_b"] = 0.01 * jax.random.normal(ks[15], (1, 2), jnp.float32)
    return p


if __name__ == "__main__":
    key = jax.random.PRNGKey(0)
    k_params, k_x, k_ew = jax.random.split(key, 3)

    # Two ring graphs of 8 nodes each (N = 16), bidirectional edges.
    num_nodes, nodes_per_graph, num_graphs = 16, 8, 2
    src, dst = [], []
    for gi in range(num_graphs):
        off = gi * nodes_per_graph
        for i in range(nodes_per_graph):
            s, d = off + i, off + (i + 1) % nodes_per_graph
            src += [s, d]
            dst += [d, s]
    edge_index = jnp.array([src, dst], dtype=jnp.int32)            # [2, 32]
    edge_weight = jax.random.uniform(k_ew, (edge_index.shape[1],),
                                     jnp.float32, 0.5, 1.5)         # [32]
    batch = jnp.repeat(jnp.arange(num_graphs, dtype=jnp.int32),
                       nodes_per_graph)                             # [16]
    x = jax.random.normal(k_x, (num_nodes, 1), jnp.float32)         # [16, 1]

    params = init_params(k_params)

    out = gcn_forward(params, x, edge_index, edge_weight, batch,
                      num_graphs=num_graphs)
    out = jax.block_until_ready(out)
    assert out.shape == (num_graphs, 2) and out.dtype == jnp.float32
    print("KERNEL_OK")
</pallas_src>

<mosaic_0001>
module attributes {stable_mosaic.version = 11 : i64} {
  func.func @_agg_kernel(%arg0: i32, %arg1: i32, %arg2: memref<128x128xbf16, #tpu.memory_space<vmem>>, %arg3: memref<128x8xbf16, #tpu.memory_space<vmem>>, %arg4: memref<1x8xf32, #tpu.memory_space<vmem>>, %arg5: memref<128x8xbf16, #tpu.memory_space<vmem>>, %arg6: memref<128x8xf32, #tpu.memory_space<vmem>>) attributes {dimension_semantics = [#tpu.dimension_semantics<parallel>, #tpu.dimension_semantics<arbitrary>], iteration_bounds = array<i64: 1, 1>, scalar_prefetch = 0 : i64, scratch_operands = 1 : i64, tpu.core_type = #tpu.core_type<tc>, window_params = [{transform_indices = @transform_0, window_bounds = array<i64: 128, 128>}, {pipeline_mode = #tpu.pipeline_mode<synchronous>, transform_indices = @transform_1, window_bounds = array<i64: 128, 8>}, {pipeline_mode = #tpu.pipeline_mode<synchronous>, transform_indices = @transform_2, window_bounds = array<i64: 1, 8>}, {transform_indices = @transform_3, window_bounds = array<i64: 128, 8>}]} {
    %c0_i32 = arith.constant 0 : i32
    %0 = arith.cmpi eq, %arg1, %c0_i32 : i32
    %1 = arith.extui %0 : i1 to i32
    %c0_i32_0 = arith.constant 0 : i32
    %2 = arith.cmpi ne, %1, %c0_i32_0 : i32
    scf.if %2 {
      %cst_9 = arith.constant 0.000000e+00 : f32
      %15 = vector.broadcast %cst_9 : f32 to vector<128x8xf32>
      %c0_10 = arith.constant 0 : index
      %c0_11 = arith.constant 0 : index
      %16 = vector.load %arg6[%c0_10, %c0_11] : memref<128x8xf32, #tpu.memory_space<vmem>>, vector<128x8xf32>
      tpu.vector_store %arg6[%c0_10, %c0_11], %15 {strides = array<i32>} : memref<128x8xf32, #tpu.memory_space<vmem>>, vector<128x8xf32>,
    } else {
    }
    %c128_i32 = arith.constant 128 : i32
    %3 = arith.muli %arg1, %c128_i32 : i32
    %4 = tpu.assume_multiple %3, 128 : i32
    %5 = arith.index_cast %4 : i32 to index
    %c0 = arith.constant 0 : index
    %6 = vector.load %arg3[%5, %c0] : memref<128x8xbf16, #tpu.memory_space<vmem>>, vector<128x8xbf16>
    %c0_1 = arith.constant 0 : index
    %c0_2 = arith.constant 0 : index
    %7 = vector.load %arg6[%c0_1, %c0_2] : memref<128x8xf32, #tpu.memory_space<vmem>>, vector<128x8xf32>
    %c0_3 = arith.constant 0 : index
    %c0_4 = arith.constant 0 : index
    %8 = vector.load %arg2[%c0_3, %c0_4] : memref<128x128xbf16, #tpu.memory_space<vmem>>, vector<128x128xbf16>
    %cst = arith.constant dense<0.000000e+00> : vector<128x8xf32>
    %9 = tpu.matmul %8, %6, %cst {dimension_numbers = #tpu.dot_dimension_numbers<[1], [0], [0], [1], [0, 0, 1, 1], [], []>} : vector<128x128xbf16>, vector<128x8xbf16>, vector<128x8xf32> -> vector<128x8xf32>
    %10 = arith.addf %7, %9 : vector<128x8xf32>
    %c0_5 = arith.constant 0 : index
    %c0_6 = arith.constant 0 : index
    %11 = vector.load %arg6[%c0_5, %c0_6] : memref<128x8xf32, #tpu.memory_space<vmem>>, vector<128x8xf32>
    tpu.vector_store %arg6[%c0_5, %c0_6], %10 {strides = array<i32>} : memref<128x8xf32, #tpu.memory_space<vmem>>, vector<128x8xf32>,
    %c0_i32_7 = arith.constant 0 : i32
    %12 = arith.cmpi eq, %arg1, %c0_i32_7 : i32
    %13 = arith.extui %12 : i1 to i32
    %c0_i32_8 = arith.constant 0 : i32
    %14 = arith.cmpi ne, %13, %c0_i32_8 : i32
    scf.if %14 {
      %c0_9 = arith.constant 0 : index
      %c0_10 = arith.constant 0 : index
      %15 = vector.load %arg6[%c0_9, %c0_10] : memref<128x8xf32, #tpu.memory_space<vmem>>, vector<128x8xf32>
      %c0_11 = arith.constant 0 : index
      %c0_12 = arith.constant 0 : index
      %16 = vector.load %arg4[%c0_11, %c0_12] : memref<1x8xf32, #tpu.memory_space<vmem>>, vector<1x8xf32>
      %17 = vector.broadcast %16 : vector<1x8xf32> to vector<128x8xf32>
      %18 = arith.addf %15, %17 : vector<128x8xf32>
      %19 = arith.truncf %18 : vector<128x8xf32> to vector<128x8xbf16>
      %c0_13 = arith.constant 0 : index
      %c0_14 = arith.constant 0 : index
      %20 = vector.load %arg5[%c0_13, %c0_14] : memref<128x8xbf16, #tpu.memory_space<vmem>>, vector<128x8xbf16>
      tpu.vector_store %arg5[%c0_13, %c0_14], %19 {strides = array<i32>} : memref<128x8xbf16, #tpu.memory_space<vmem>>, vector<128x8xbf16>,
    } else {
    }
    return
  }
  func.func @transform_0(%arg0: i32, %arg1: i32) -> (i32, i32) {
    %c0_i32 = arith.constant 0 : i32
    return %arg0, %arg1 : i32, i32
  }
  func.func @transform_1(%arg0: i32, %arg1: i32) -> (i32, i32) {
    %c0_i32 = arith.constant 0 : i32
    %c0_i32_0 = arith.constant 0 : i32
    %c0_i32_1 = arith.constant 0 : i32
    return %c0_i32, %c0_i32_0 : i32, i32
  }
  func.func @transform_2(%arg0: i32, %arg1: i32) -> (i32, i32) {
    %c0_i32 = arith.constant 0 : i32
    %c0_i32_0 = arith.constant 0 : i32
    %c0_i32_1 = arith.constant 0 : i32
    return %c0_i32, %c0_i32_0 : i32, i32
  }
  func.func @transform_3(%arg0: i32, %arg1: i32) -> (i32, i32) {
    %c0_i32 = arith.constant 0 : i32
    %c0_i32_0 = arith.constant 0 : i32
    return %arg0, %c0_i32 : i32, i32
  }
}

module attributes {stable_mosaic.version = 11 : i64} {
  func.func @_dense_kernel(%arg0: i32, %arg1: memref<128x8xbf16, #tpu.memory_space<vmem>>, %arg2: memref<8x128xbf16, #tpu.memory_space<vmem>>, %arg3: memref<1x128xf32, #tpu.memory_space<vmem>>, %arg4: memref<128x128xbf16, #tpu.memory_space<vmem>>) attributes {dimension_semantics = [#tpu.dimension_semantics<parallel>], iteration_bounds = array<i64: 1>, scalar_prefetch = 0 : i64, scratch_operands = 0 : i64, tpu.core_type = #tpu.core_type<tc>, window_params = [{transform_indices = @transform_0, window_bounds = array<i64: 128, 8>}, {pipeline_mode = #tpu.pipeline_mode<synchronous>, transform_indices = @transform_1, window_bounds = array<i64: 8, 128>}, {pipeline_mode = #tpu.pipeline_mode<synchronous>, transform_indices = @transform_2, window_bounds = array<i64: 1, 128>}, {transform_indices = @transform_3, window_bounds = array<i64: 128, 128>}]} {
    %c0 = arith.constant 0 : index
    %c0_0 = arith.constant 0 : index
    %0 = vector.load %arg1[%c0, %c0_0] : memref<128x8xbf16, #tpu.memory_space<vmem>>, vector<128x8xbf16>
    %c0_1 = arith.constant 0 : index
    %c0_2 = arith.constant 0 : index
    %1 = vector.load %arg2[%c0_1, %c0_2] : memref<8x128xbf16, #tpu.memory_space<vmem>>, vector<8x128xbf16>
    %cst = arith.constant dense<0.000000e+00> : vector<128x128xf32>
    %2 = tpu.matmul %0, %1, %cst {dimension_numbers = #tpu.dot_dimension_numbers<[1], [0], [0], [1], [0, 0, 1, 1], [], []>} : vector<128x8xbf16>, vector<8x128xbf16>, vector<128x128xf32> -> vector<128x128xf32>
    %c0_3 = arith.constant 0 : index
    %c0_4 = arith.constant 0 : index
    %3 = vector.load %arg3[%c0_3, %c0_4] : memref<1x128xf32, #tpu.memory_space<vmem>>, vector<1x128xf32>
    %4 = vector.broadcast %3 : vector<1x128xf32> to vector<128x128xf32>
    %5 = arith.addf %2, %4 : vector<128x128xf32>
    %cst_5 = arith.constant 0.000000e+00 : f32
    %6 = vector.broadcast %cst_5 : f32 to vector<128x128xf32>
    %7 = arith.maximumf %5, %6 : vector<128x128xf32>
    %8 = arith.truncf %7 : vector<128x128xf32> to vector<128x128xbf16>
    %c0_6 = arith.constant 0 : index
    %c0_7 = arith.constant 0 : index
    %9 = vector.load %arg4[%c0_6, %c0_7] : memref<128x128xbf16, #tpu.memory_space<vmem>>, vector<128x128xbf16>
    tpu.vector_store %arg4[%c0_6, %c0_7], %8 {strides = array<i32>} : memref<128x128xbf16, #tpu.memory_space<vmem>>, vector<128x128xbf16>,
    return
  }
  func.func @transform_0(%arg0: i32) -> (i32, i32) {
    %c0_i32 = arith.constant 0 : i32
    %c0_i32_0 = arith.constant 0 : i32
    return %arg0, %c0_i32 : i32, i32
  }
  func.func @transform_1(%arg0: i32) -> (i32, i32) {
    %c0_i32 = arith.constant 0 : i32
    %c0_i32_0 = arith.constant 0 : i32
    %c0_i32_1 = arith.constant 0 : i32
    return %c0_i32, %c0_i32_0 : i32, i32
  }
  func.func @transform_2(%arg0: i32) -> (i32, i32) {
    %c0_i32 = arith.constant 0 : i32
    %c0_i32_0 = arith.constant 0 : i32
    %c0_i32_1 = arith.constant 0 : i32
    return %c0_i32, %c0_i32_0 : i32, i32
  }
  func.func @transform_3(%arg0: i32) -> (i32, i32) {
    %c0_i32 = arith.constant 0 : i32
    %c0_i32_0 = arith.constant 0 : i32
    return %arg0, %c0_i32 : i32, i32
  }
}

module attributes {stable_mosaic.version = 11 : i64} {
  func.func @_dense_kernel(%arg0: i32, %arg1: memref<128x128xbf16, #tpu.memory_space<vmem>>, %arg2: memref<128x128xbf16, #tpu.memory_space<vmem>>, %arg3: memref<1x128xf32, #tpu.memory_space<vmem>>, %arg4: memref<128x128xbf16, #tpu.memory_space<vmem>>) attributes {dimension_semantics = [#tpu.dimension_semantics<parallel>], iteration_bounds = array<i64: 1>, scalar_prefetch = 0 : i64, scratch_operands = 0 : i64, tpu.core_type = #tpu.core_type<tc>, window_params = [{transform_indices = @transform_0, window_bounds = array<i64: 128, 128>}, {pipeline_mode = #tpu.pipeline_mode<synchronous>, transform_indices = @transform_1, window_bounds = array<i64: 128, 128>}, {pipeline_mode = #tpu.pipeline_mode<synchronous>, transform_indices = @transform_2, window_bounds = array<i64: 1, 128>}, {transform_indices = @transform_3, window_bounds = array<i64: 128, 128>}]} {
    %c0 = arith.constant 0 : index
    %c0_0 = arith.constant 0 : index
    %0 = vector.load %arg1[%c0, %c0_0] : memref<128x128xbf16, #tpu.memory_space<vmem>>, vector<128x128xbf16>
    %c0_1 = arith.constant 0 : index
    %c0_2 = arith.constant 0 : index
    %1 = vector.load %arg2[%c0_1, %c0_2] : memref<128x128xbf16, #tpu.memory_space<vmem>>, vector<128x128xbf16>
    %cst = arith.constant dense<0.000000e+00> : vector<128x128xf32>
    %2 = tpu.matmul %0, %1, %cst {dimension_numbers = #tpu.dot_dimension_numbers<[1], [0], [0], [1], [0, 0, 1, 1], [], []>} : vector<128x128xbf16>, vector<128x128xbf16>, vector<128x128xf32> -> vector<128x128xf32>
    %c0_3 = arith.constant 0 : index
    %c0_4 = arith.constant 0 : index
    %3 = vector.load %arg3[%c0_3, %c0_4] : memref<1x128xf32, #tpu.memory_space<vmem>>, vector<1x128xf32>
    %4 = vector.broadcast %3 : vector<1x128xf32> to vector<128x128xf32>
    %5 = arith.addf %2, %4 : vector<128x128xf32>
    %6 = arith.truncf %5 : vector<128x128xf32> to vector<128x128xbf16>
    %c0_5 = arith.constant 0 : index
    %c0_6 = arith.constant 0 : index
    %7 = vector.load %arg4[%c0_5, %c0_6] : memref<128x128xbf16, #tpu.memory_space<vmem>>, vector<128x128xbf16>
    tpu.vector_store %arg4[%c0_5, %c0_6], %6 {strides = array<i32>} : memref<128x128xbf16, #tpu.memory_space<vmem>>, vector<128x128xbf16>,
    return
  }
  func.func @transform_0(%arg0: i32) -> (i32, i32) {
    %c0_i32 = arith.constant 0 : i32
    %c0_i32_0 = arith.constant 0 : i32
    return %arg0, %c0_i32 : i32, i32
  }
  func.func @transform_1(%arg0: i32) -> (i32, i32) {
    %c0_i32 = arith.constant 0 : i32
    %c0_i32_0 = arith.constant 0 : i32
    %c0_i32_1 = arith.constant 0 : i32
    return %c0_i32, %c0_i32_0 : i32, i32
  }
  func.func @transform_2(%arg0: i32) -> (i32, i32) {
    %c0_i32 = arith.constant 0 : i32
    %c0_i32_0 = arith.constant 0 : i32
    %c0_i32_1 = arith.constant 0 : i32
    return %c0_i32, %c0_i32_0 : i32, i32
  }
  func.func @transform_3(%arg0: i32) -> (i32, i32) {
    %c0_i32 = arith.constant 0 : i32
    %c0_i32_0 = arith.constant 0 : i32
    return %arg0, %c0_i32 : i32, i32
  }
}

module attributes {stable_mosaic.version = 11 : i64} {
  func.func @_agg_kernel(%arg0: i32, %arg1: i32, %arg2: memref<128x128xbf16, #tpu.memory_space<vmem>>, %arg3: memref<128x128xbf16, #tpu.memory_space<vmem>>, %arg4: memref<1x128xf32, #tpu.memory_space<vmem>>, %arg5: memref<128x128xbf16, #tpu.memory_space<vmem>>, %arg6: memref<128x128xf32, #tpu.memory_space<vmem>>) attributes {dimension_semantics = [#tpu.dimension_semantics<parallel>, #tpu.dimension_semantics<arbitrary>], iteration_bounds = array<i64: 1, 1>, scalar_prefetch = 0 : i64, scratch_operands = 1 : i64, tpu.core_type = #tpu.core_type<tc>, window_params = [{transform_indices = @transform_0, window_bounds = array<i64: 128, 128>}, {pipeline_mode = #tpu.pipeline_mode<synchronous>, transform_indices = @transform_1, window_bounds = array<i64: 128, 128>}, {pipeline_mode = #tpu.pipeline_mode<synchronous>, transform_indices = @transform_2, window_bounds = array<i64: 1, 128>}, {transform_indices = @transform_3, window_bounds = array<i64: 128, 128>}]} {
    %c0_i32 = arith.constant 0 : i32
    %0 = arith.cmpi eq, %arg1, %c0_i32 : i32
    %1 = arith.extui %0 : i1 to i32
    %c0_i32_0 = arith.constant 0 : i32
    %2 = arith.cmpi ne, %1, %c0_i32_0 : i32
    scf.if %2 {
      %cst_9 = arith.constant 0.000000e+00 : f32
      %15 = vector.broadcast %cst_9 : f32 to vector<128x128xf32>
      %c0_10 = arith.constant 0 : index
      %c0_11 = arith.constant 0 : index
      %16 = vector.load %arg6[%c0_10, %c0_11] : memref<128x128xf32, #tpu.memory_space<vmem>>, vector<128x128xf32>
      tpu.vector_store %arg6[%c0_10, %c0_11], %15 {strides = array<i32>} : memref<128x128xf32, #tpu.memory_space<vmem>>, vector<128x128xf32>,
    } else {
    }
    %c128_i32 = arith.constant 128 : i32
    %3 = arith.muli %arg1, %c128_i32 : i32
    %4 = tpu.assume_multiple %3, 128 : i32
    %5 = arith.index_cast %4 : i32 to index
    %c0 = arith.constant 0 : index
    %6 = vector.load %arg3[%5, %c0] : memref<128x128xbf16, #tpu.memory_space<vmem>>, vector<128x128xbf16>
    %c0_1 = arith.constant 0 : index
    %c0_2 = arith.constant 0 : index
    %7 = vector.load %arg6[%c0_1, %c0_2] : memref<128x128xf32, #tpu.memory_space<vmem>>, vector<128x128xf32>
    %c0_3 = arith.constant 0 : index
    %c0_4 = arith.constant 0 : index
    %8 = vector.load %arg2[%c0_3, %c0_4] : memref<128x128xbf16, #tpu.memory_space<vmem>>, vector<128x128xbf16>
    %cst = arith.constant dense<0.000000e+00> : vector<128x128xf32>
    %9 = tpu.matmul %8, %6, %cst {dimension_numbers = #tpu.dot_dimension_numbers<[1], [0], [0], [1], [0, 0, 1, 1], [], []>} : vector<128x128xbf16>, vector<128x128xbf16>, vector<128x128xf32> -> vector<128x128xf32>
    %10 = arith.addf %7, %9 : vector<128x128xf32>
    %c0_5 = arith.constant 0 : index
    %c0_6 = arith.constant 0 : index
    %11 = vector.load %arg6[%c0_5, %c0_6] : memref<128x128xf32, #tpu.memory_space<vmem>>, vector<128x128xf32>
    tpu.vector_store %arg6[%c0_5, %c0_6], %10 {strides = array<i32>} : memref<128x128xf32, #tpu.memory_space<vmem>>, vector<128x128xf32>,
    %c0_i32_7 = arith.constant 0 : i32
    %12 = arith.cmpi eq, %arg1, %c0_i32_7 : i32
    %13 = arith.extui %12 : i1 to i32
    %c0_i32_8 = arith.constant 0 : i32
    %14 = arith.cmpi ne, %13, %c0_i32_8 : i32
    scf.if %14 {
      %c0_9 = arith.constant 0 : index
      %c0_10 = arith.constant 0 : index
      %15 = vector.load %arg6[%c0_9, %c0_10] : memref<128x128xf32, #tpu.memory_space<vmem>>, vector<128x128xf32>
      %c0_11 = arith.constant 0 : index
      %c0_12 = arith.constant 0 : index
      %16 = vector.load %arg4[%c0_11, %c0_12] : memref<1x128xf32, #tpu.memory_space<vmem>>, vector<1x128xf32>
      %17 = vector.broadcast %16 : vector<1x128xf32> to vector<128x128xf32>
      %18 = arith.addf %15, %17 : vector<128x128xf32>
      %cst_13 = arith.constant 0.000000e+00 : f32
      %19 = vector.broadcast %cst_13 : f32 to vector<128x128xf32>
      %20 = arith.maximumf %18, %19 : vector<128x128xf32>
      %21 = arith.truncf %20 : vector<128x128xf32> to vector<128x128xbf16>
      %c0_14 = arith.constant 0 : index
      %c0_15 = arith.constant 0 : index
      %22 = vector.load %arg5[%c0_14, %c0_15] : memref<128x128xbf16, #tpu.memory_space<vmem>>, vector<128x128xbf16>
      tpu.vector_store %arg5[%c0_14, %c0_15], %21 {strides = array<i32>} : memref<128x128xbf16, #tpu.memory_space<vmem>>, vector<128x128xbf16>,
    } else {
    }
    return
  }
  func.func @transform_0(%arg0: i32, %arg1: i32) -> (i32, i32) {
    %c0_i32 = arith.constant 0 : i32
    return %arg0, %arg1 : i32, i32
  }
  func.func @transform_1(%arg0: i32, %arg1: i32) -> (i32, i32) {
    %c0_i32 = arith.constant 0 : i32
    %c0_i32_0 = arith.constant 0 : i32
    %c0_i32_1 = arith.constant 0 : i32
    return %c0_i32, %c0_i32_0 : i32, i32
  }
  func.func @transform_2(%arg0: i32, %arg1: i32) -> (i32, i32) {
    %c0_i32 = arith.constant 0 : i32
    %c0_i32_0 = arith.constant 0 : i32
    %c0_i32_1 = arith.constant 0 : i32
    return %c0_i32, %c0_i32_0 : i32, i32
  }
  func.func @transform_3(%arg0: i32, %arg1: i32) -> (i32, i32) {
    %c0_i32 = arith.constant 0 : i32
    %c0_i32_0 = arith.constant 0 : i32
    return %arg0, %c0_i32 : i32, i32
  }
}

module attributes {stable_mosaic.version = 11 : i64} {
  func.func @_mlp_head_kernel(%arg0: memref<2x128xf32, #tpu.memory_space<vmem>>, %arg1: memref<128x64xf32, #tpu.memory_space<vmem>>, %arg2: memref<1x64xf32, #tpu.memory_space<vmem>>, %arg3: memref<64x16xf32, #tpu.memory_space<vmem>>, %arg4: memref<1x16xf32, #tpu.memory_space<vmem>>, %arg5: memref<16x2xf32, #tpu.memory_space<vmem>>, %arg6: memref<1x2xf32, #tpu.memory_space<vmem>>, %arg7: memref<2x2xf32, #tpu.memory_space<vmem>>) attributes {dimension_semantics = [], scalar_prefetch = 0 : i64, scratch_operands = 0 : i64, tpu.core_type = #tpu.core_type<tc>} {
    %c0 = arith.constant 0 : index
    %c0_0 = arith.constant 0 : index
    %0 = vector.load %arg0[%c0, %c0_0] : memref<2x128xf32, #tpu.memory_space<vmem>>, vector<2x128xf32>
    %c0_1 = arith.constant 0 : index
    %c0_2 = arith.constant 0 : index
    %1 = vector.load %arg1[%c0_1, %c0_2] : memref<128x64xf32, #tpu.memory_space<vmem>>, vector<128x64xf32>
    %cst = arith.constant dense<0.000000e+00> : vector<2x64xf32>
    %2 = tpu.matmul %0, %1, %cst {dimension_numbers = #tpu.dot_dimension_numbers<[1], [0], [0], [1], [0, 0, 1, 1], [], []>} : vector<2x128xf32>, vector<128x64xf32>, vector<2x64xf32> -> vector<2x64xf32>
    %c0_3 = arith.constant 0 : index
    %c0_4 = arith.constant 0 : index
    %3 = vector.load %arg2[%c0_3, %c0_4] : memref<1x64xf32, #tpu.memory_space<vmem>>, vector<1x64xf32>
    %4 = vector.broadcast %3 : vector<1x64xf32> to vector<2x64xf32>
    %5 = arith.addf %2, %4 : vector<2x64xf32>
    %cst_5 = arith.constant 0.000000e+00 : f32
    %6 = vector.broadcast %cst_5 : f32 to vector<2x64xf32>
    %7 = arith.maximumf %5, %6 : vector<2x64xf32>
    %c0_6 = arith.constant 0 : index
    %c0_7 = arith.constant 0 : index
    %8 = vector.load %arg3[%c0_6, %c0_7] : memref<64x16xf32, #tpu.memory_space<vmem>>, vector<64x16xf32>
    %cst_8 = arith.constant dense<0.000000e+00> : vector<2x16xf32>
    %9 = tpu.matmul %7, %8, %cst_8 {dimension_numbers = #tpu.dot_dimension_numbers<[1], [0], [0], [1], [0, 0, 1, 1], [], []>} : vector<2x64xf32>, vector<64x16xf32>, vector<2x16xf32> -> vector<2x16xf32>
    %c0_9 = arith.constant 0 : index
    %c0_10 = arith.constant 0 : index
    %10 = vector.load %arg4[%c0_9, %c0_10] : memref<1x16xf32, #tpu.memory_space<vmem>>, vector<1x16xf32>
    %11 = vector.broadcast %10 : vector<1x16xf32> to vector<2x16xf32>
    %12 = arith.addf %9, %11 : vector<2x16xf32>
    %cst_11 = arith.constant 0.000000e+00 : f32
    %13 = vector.broadcast %cst_11 : f32 to vector<2x16xf32>
    %14 = arith.maximumf %12, %13 : vector<2x16xf32>
    %c0_12 = arith.constant 0 : index
    %c0_13 = arith.constant 0 : index
    %15 = vector.load %arg5[%c0_12, %c0_13] : memref<16x2xf32, #tpu.memory_space<vmem>>, vector<16x2xf32>
    %cst_14 = arith.constant dense<0.000000e+00> : vector<2x2xf32>
    %16 = tpu.matmul %14, %15, %cst_14 {dimension_numbers = #tpu.dot_dimension_numbers<[1], [0], [0], [1], [0, 0, 1, 1], [], []>} : vector<2x16xf32>, vector<16x2xf32>, vector<2x2xf32> -> vector<2x2xf32>
    %c0_15 = arith.constant 0 : index
    %c0_16 = arith.constant 0 : index
    %17 = vector.load %arg6[%c0_15, %c0_16] : memref<1x2xf32, #tpu.memory_space<vmem>>, vector<1x2xf32>
    %18 = vector.broadcast %17 : vector<1x2xf32> to vector<2x2xf32>
    %19 = arith.addf %16, %18 : vector<2x2xf32>
    %c0_17 = arith.constant 0 : index
    %c0_18 = arith.constant 0 : index
    %20 = vector.load %arg7[%c0_17, %c0_18] : memref<2x2xf32, #tpu.memory_space<vmem>>, vector<2x2xf32>
    tpu.vector_store %arg7[%c0_17, %c0_18], %19 {strides = array<i32>} : memref<2x2xf32, #tpu.memory_space<vmem>>, vector<2x2xf32>,
    return
  }
}

module attributes {stable_mosaic.version = 11 : i64} {
  func.func @_pool_kernel(%arg0: i32, %arg1: memref<128x1xi32, #tpu.memory_space<vmem>>, %arg2: memref<128x128xbf16, #tpu.memory_space<vmem>>, %arg3: memref<8x128xf32, #tpu.memory_space<vmem>>) attributes {dimension_semantics = [#tpu.dimension_semantics<arbitrary>], iteration_bounds = array<i64: 1>, scalar_prefetch = 0 : i64, scratch_operands = 0 : i64, tpu.core_type = #tpu.core_type<tc>, window_params = [{transform_indices = @transform_0, window_bounds = array<i64: 128, 1>}, {transform_indices = @transform_1, window_bounds = array<i64: 128, 128>}, {pipeline_mode = #tpu.pipeline_mode<synchronous>, transform_indices = @transform_2, window_bounds = array<i64: 8, 128>}]} {
    %c0_i32 = arith.constant 0 : i32
    %0 = arith.cmpi eq, %arg0, %c0_i32 : i32
    %1 = arith.extui %0 : i1 to i32
    %c0_i32_0 = arith.constant 0 : i32
    %2 = arith.cmpi ne, %1, %c0_i32_0 : i32
    scf.if %2 {
      %cst_13 = arith.constant -3.000000e+38 : f32
      %27 = vector.broadcast %cst_13 : f32 to vector<8x128xf32>
      %c0_14 = arith.constant 0 : index
      %c0_15 = arith.constant 0 : index
      %28 = vector.load %arg3[%c0_14, %c0_15] : memref<8x128xf32, #tpu.memory_space<vmem>>, vector<8x128xf32>
      tpu.vector_store %arg3[%c0_14, %c0_15], %27 {strides = array<i32>} : memref<8x128xf32, #tpu.memory_space<vmem>>, vector<8x128xf32>,
    } else {
    }
    %c0 = arith.constant 0 : index
    %c0_1 = arith.constant 0 : index
    %3 = vector.load %arg2[%c0, %c0_1] : memref<128x128xbf16, #tpu.memory_space<vmem>>, vector<128x128xbf16>
    %4 = arith.extf %3 : vector<128x128xbf16> to vector<128x128xf32>
    %c0_2 = arith.constant 0 : index
    %c0_3 = arith.constant 0 : index
    %5 = vector.load %arg1[%c0_2, %c0_3] : memref<128x1xi32, #tpu.memory_space<vmem>>, vector<128x1xi32>
    %c0_i32_4 = arith.constant 0 : i32
    %6 = vector.broadcast %c0_i32_4 : i32 to vector<128x1xi32>
    %7 = arith.cmpi eq, %5, %6 : vector<128x1xi32>
    %cst = arith.constant -3.000000e+38 : f32
    %8 = vector.shape_cast %7 : vector<128x1xi1> to vector<128x1xi1>
    %9 = vector.broadcast %8 : vector<128x1xi1> to vector<128x128xi1>
    %10 = vector.broadcast %cst : f32 to vector<128x128xf32>
    %11 = arith.select %9, %4, %10 : vector<128x128xi1>, vector<128x128xf32>
    %cst_5 = arith.constant dense<0xFF800000> : vector<128xf32>
    %12 = vector.multi_reduction <maximumf>, %11, %cst_5 [0] : vector<128x128xf32> to vector<128xf32>
    %13 = vector.shape_cast %12 : vector<128xf32> to vector<1x128xf32>
    %c1_i32 = arith.constant 1 : i32
    %14 = vector.broadcast %c1_i32 : i32 to vector<128x1xi32>
    %15 = arith.cmpi eq, %5, %14 : vector<128x1xi32>
    %cst_6 = arith.constant -3.000000e+38 : f32
    %16 = vector.shape_cast %15 : vector<128x1xi1> to vector<128x1xi1>
    %17 = vector.broadcast %16 : vector<128x1xi1> to vector<128x128xi1>
    %18 = vector.broadcast %cst_6 : f32 to vector<128x128xf32>
    %19 = arith.select %17, %4, %18 : vector<128x128xi1>, vector<128x128xf32>
    %cst_7 = arith.constant dense<0xFF800000> : vector<128xf32>
    %20 = vector.multi_reduction <maximumf>, %19, %cst_7 [0] : vector<128x128xf32> to vector<128xf32>
    %21 = vector.shape_cast %20 : vector<128xf32> to vector<1x128xf32>
    %cst_8 = arith.constant -3.000000e+38 : f32
    %22 = vector.broadcast %cst_8 : f32 to vector<6x128xf32>
    %23 = tpu.concatenate %13, %21, %22 in 0 : vector<1x128xf32>, vector<1x128xf32>, vector<6x128xf32> -> vector<8x128xf32>
    %c0_9 = arith.constant 0 : index
    %c0_10 = arith.constant 0 : index
    %24 = vector.load %arg3[%c0_9, %c0_10] : memref<8x128xf32, #tpu.memory_space<vmem>>, vector<8x128xf32>
    %25 = arith.maximumf %24, %23 : vector<8x128xf32>
    %c0_11 = arith.constant 0 : index
    %c0_12 = arith.constant 0 : index
    %26 = vector.load %arg3[%c0_11, %c0_12] : memref<8x128xf32, #tpu.memory_space<vmem>>, vector<8x128xf32>
    tpu.vector_store %arg3[%c0_11, %c0_12], %25 {strides = array<i32>} : memref<8x128xf32, #tpu.memory_space<vmem>>, vector<8x128xf32>,
    return
  }
  func.func @transform_0(%arg0: i32) -> (i32, i32) {
    %c0_i32 = arith.constant 0 : i32
    %c0_i32_0 = arith.constant 0 : i32
    return %arg0, %c0_i32 : i32, i32
  }
  func.func @transform_1(%arg0: i32) -> (i32, i32) {
    %c0_i32 = arith.constant 0 : i32
    %c0_i32_0 = arith.constant 0 : i32
    return %arg0, %c0_i32 : i32, i32
  }
  func.func @transform_2(%arg0: i32) -> (i32, i32) {
    %c0_i32 = arith.constant 0 : i32
    %c0_i32_0 = arith.constant 0 : i32
    %c0_i32_1 = arith.constant 0 : i32
    return %c0_i32, %c0_i32_0 : i32, i32
  }
}

</mosaic_0001>

<llo_original>
// kernel: gcn_forward.13
$region0: #{gcn_forward.13}
  #allocation0 [shape = 'u32[]', space=smem, size = 0x4, offset = 0x4, fixed_abs, tag = 'smem constant byte address 0x4 - core index']
  #allocation1 [shape = 'u32[72,128]{1,0:T(1,128)}', space=vmem, size = 0x9000, scoped, tag = 'internal scratch']
  %s0 = inlined_call_operand.vmem [shape: bf16[128,8], index: 0, kind: input, shape index: {}]
  %s1 = inlined_call_operand.vmem [shape: bf16[8,128], index: 1, kind: input, shape index: {}]
  %s2 = inlined_call_operand.vmem [shape: f32[1,128], index: 2, kind: input, shape index: {}]
  %s3 = inlined_call_operand.vmem [shape: bf16[128,128], index: 3, kind: output, shape index: {}]
  %s4 = sld [smem:[#allocation0]]
  $region22: #{gcn_forward.13} parent=0
    _
  %s6 = ssub.s32 1, %s4
  %s7 = scalar_select 0, %s6, %s4
  // Predicated region
  $region2: #{gcn_forward.13} parent=0 // pred_check
    _
  $region3: #{gcn_forward.13} parent=0 // pred_check_branch
    %9 = sbr.rel (0) target = $region5
  $region4: #{gcn_forward.13} parent=0 // pred_region
    _
  $region5: #{gcn_forward.13} parent=0 // pred_fallthru
    _
  // Predicated region
  $region6: #{gcn_forward.13} parent=0 // pred_check
    _
  $region7: #{gcn_forward.13} parent=0 // pred_check_branch
    %11 = sbr.rel (0) target = $region9
  $region8: #{gcn_forward.13} parent=0 // pred_region
    _
  $region9: #{gcn_forward.13} parent=0 // pred_fallthru
    _
  // Predicated region
  $region10: #{gcn_forward.13} parent=0 // pred_check
    _
  $region11: #{gcn_forward.13} parent=0 // pred_check_branch
    %13 = sbr.rel (0) target = $region13
  $region12: #{gcn_forward.13} parent=0 // pred_region
    _
  $region13: #{gcn_forward.13} parent=0 // pred_fallthru
    _
  %v15 = vld [vmem:[%s0] sm:$0xf]
  %v16 = vld [vmem:[%s0 + $0x4] sm:$0xf]
  %v17 = vld [vmem:[%s0 + $0x8] sm:$0xf]
  %v18 = vld [vmem:[%s0 + $0xc] sm:$0xf]
  %v19 = vld [vmem:[%s0 + $0x10] sm:$0xf]
  %v20 = vld [vmem:[%s0 + $0x14] sm:$0xf]
  %v21 = vld [vmem:[%s0 + $0x18] sm:$0xf]
  %v22 = vld [vmem:[%s0 + $0x1c] sm:$0xf]
  %v23 = vld [vmem:[%s0 + $0x20] sm:$0xf]
  %v24 = vld [vmem:[%s0 + $0x24] sm:$0xf]
  %v25 = vld [vmem:[%s0 + $0x28] sm:$0xf]
  %v26 = vld [vmem:[%s0 + $0x2c] sm:$0xf]
  %v27 = vld [vmem:[%s0 + $0x30] sm:$0xf]
  %v28 = vld [vmem:[%s0 + $0x34] sm:$0xf]
  %v29 = vld [vmem:[%s0 + $0x38] sm:$0xf]
  %v30 = vld [vmem:[%s0 + $0x3c] sm:$0xf]
  %v31 = vld [vmem:[%s1] sm:$0xf]
  %v32 = vld [vmem:[%s2] sm:$0x1]
  %v34 = vperm.slane %v32, 0
  %v52 = vunpack.c.l.b16 %v15
  %v53 = vunpack.c.l.b16 %v16
  %v54 = vunpack.c.l.b16 %v17
  %v55 = vunpack.c.l.b16 %v18
  %v56 = vunpack.c.l.b16 %v19
  %v57 = vunpack.c.l.b16 %v20
  %v58 = vunpack.c.l.b16 %v21
  %v59 = vunpack.c.l.b16 %v22
  %v60 = vunpack.c.l.b16 %v23
  %v61 = vunpack.c.l.b16 %v24
  %v62 = vunpack.c.l.b16 %v25
  %v63 = vunpack.c.l.b16 %v26
  %v64 = vunpack.c.l.b16 %v27
  %v65 = vunpack.c.l.b16 %v28
  %v66 = vunpack.c.l.b16 %v29
  %v67 = vunpack.c.l.b16 %v30
  %v68 = vpack.c.b16 %v53, %v52
  %v69 = vpack.c.b16 %v55, %v54
  %v70 = vpack.c.b16 %v57, %v56
  %v71 = vpack.c.b16 %v59, %v58
  %v72 = vpack.c.b16 %v61, %v60
  %v73 = vpack.c.b16 %v63, %v62
  %v74 = vpack.c.b16 %v65, %v64
  %v75 = vpack.c.b16 %v67, %v66
  %vm76 = vcmask 64512
  %v78 = vsel %vm76, %v68, 0
  %v81 = vsel %vm76, %v69, 0
  %v84 = vsel %vm76, %v70, 0
  %v87 = vsel %vm76, %v71, 0
  %v90 = vsel %vm76, %v72, 0
  %v93 = vsel %vm76, %v73, 0
  %v96 = vsel %vm76, %v74, 0
  %v99 = vsel %vm76, %v75, 0
  %vm101 = vcmask 1043456
  %v103 = vsel %vm101, %v31, 0
  %105 = vmatpush.bf16.msra.mxu0 0
  %106 = vmatpush.bf16.msra.mxu0 0
  %107 = vmatpush.bf16.msra.mxu0 0
  %108 = vmatpush.bf16.msra.mxu0 0
  %109 = vmatpush.bf16.msra.mxu0 0
  %110 = vmatpush.bf16.msra.mxu0 0
  %111 = vmatpush.bf16.msra.mxu0 0
  %112 = vmatpush.bf16.msra.mxu0 %v103
  %113 = vmatmul.bf16.gmra.mxu0 %v78
  %v114 = vpop.f32.mrf.mxu0
  %v115 = vadd.f32 %v34, %v114
  %v116 = vpop.f32.mrf.mxu0
  %v117 = vadd.f32 %v34, %v116
  %118 = vmatmul.bf16.gmra.mxu0 %v81
  %v119 = vpop.f32.mrf.mxu0
  %v120 = vadd.f32 %v34, %v119
  %v121 = vpop.f32.mrf.mxu0
  %v122 = vadd.f32 %v34, %v121
  %123 = vmatmul.bf16.gmra.mxu0 %v84
  %v124 = vpop.f32.mrf.mxu0
  %v125 = vadd.f32 %v34, %v124
  %v126 = vpop.f32.mrf.mxu0
  %v127 = vadd.f32 %v34, %v126
  %128 = vmatmul.bf16.gmra.mxu0 %v87
  %v129 = vpop.f32.mrf.mxu0
  %v130 = vadd.f32 %v34, %v129
  %v131 = vpop.f32.mrf.mxu0
  %v132 = vadd.f32 %v34, %v131
  %133 = vmatmul.bf16.gmra.mxu0 %v90
  %v134 = vpop.f32.mrf.mxu0
  %v135 = vadd.f32 %v34, %v134
  %v136 = vpop.f32.mrf.mxu0
  %v137 = vadd.f32 %v34, %v136
  %138 = vmatmul.bf16.gmra.mxu0 %v93
  %v139 = vpop.f32.mrf.mxu0
  %v140 = vadd.f32 %v34, %v139
  %v141 = vpop.f32.mrf.mxu0
  %v142 = vadd.f32 %v34, %v141
  %143 = vmatmul.bf16.gmra.mxu0 %v96
  %v144 = vpop.f32.mrf.mxu0
  %v145 = vadd.f32 %v34, %v144
  %v146 = vpop.f32.mrf.mxu0
  %v147 = vadd.f32 %v34, %v146
  %148 = vmatmul.bf16.gmra.mxu0 %v99
  %v149 = vpop.f32.mrf.mxu0
  %v150 = vadd.f32 %v34, %v149
  %v151 = vpop.f32.mrf.mxu0
  %v152 = vadd.f32 %v34, %v151
  %153 = vdwg.mxu0
  %v154 = vmax.f32 %v115, 0.0
  %v155 = vmax.f32 %v117, 0.0
  %v156 = vmax.f32 %v120, 0.0
  %v157 = vmax.f32 %v122, 0.0
  %v158 = vmax.f32 %v125, 0.0
  %v159 = vmax.f32 %v127, 0.0
  %v160 = vmax.f32 %v130, 0.0
  %v161 = vmax.f32 %v132, 0.0
  %v162 = vmax.f32 %v135, 0.0
  %v163 = vmax.f32 %v137, 0.0
  %v164 = vmax.f32 %v140, 0.0
  %v165 = vmax.f32 %v142, 0.0
  %v166 = vmax.f32 %v145, 0.0
  %v167 = vmax.f32 %v147, 0.0
  %v168 = vmax.f32 %v150, 0.0
  %v169 = vmax.f32 %v152, 0.0
  %v170 = vpack.c.bf16 %v154, %v154
  %v171 = vpack.c.bf16 %v155, %v155
  %v172 = vpack.c.bf16 %v156, %v156
  %v173 = vpack.c.bf16 %v157, %v157
  %v174 = vpack.c.bf16 %v158, %v158
  %v175 = vpack.c.bf16 %v159, %v159
  %v176 = vpack.c.bf16 %v160, %v160
  %v177 = vpack.c.bf16 %v161, %v161
  %v178 = vpack.c.bf16 %v162, %v162
  %v179 = vpack.c.bf16 %v163, %v163
  %v180 = vpack.c.bf16 %v164, %v164
  %v181 = vpack.c.bf16 %v165, %v165
  %v182 = vpack.c.bf16 %v166, %v166
  %v183 = vpack.c.bf16 %v167, %v167
  %v184 = vpack.c.bf16 %v168, %v168
  %v185 = vpack.c.bf16 %v169, %v169
  %186 = vst [vmem:[%s3] sm:$0xf] %v170
  %187 = vst [vmem:[%s3 + $0x4] sm:$0xf] %v171
  %188 = vst [vmem:[%s3 + $0x8] sm:$0xf] %v172
  %189 = vst [vmem:[%s3 + $0xc] sm:$0xf] %v173
  %190 = vst [vmem:[%s3 + $0x10] sm:$0xf] %v174
  %191 = vst [vmem:[%s3 + $0x14] sm:$0xf] %v175
  %192 = vst [vmem:[%s3 + $0x18] sm:$0xf] %v176
  %193 = vst [vmem:[%s3 + $0x1c] sm:$0xf] %v177
  %194 = vst [vmem:[%s3 + $0x20] sm:$0xf] %v178
  %195 = vst [vmem:[%s3 + $0x24] sm:$0xf] %v179
  %196 = vst [vmem:[%s3 + $0x28] sm:$0xf] %v180
  %197 = vst [vmem:[%s3 + $0x2c] sm:$0xf] %v181
  %198 = vst [vmem:[%s3 + $0x30] sm:$0xf] %v182
  %199 = vst [vmem:[%s3 + $0x34] sm:$0xf] %v183
  %200 = vst [vmem:[%s3 + $0x38] sm:$0xf] %v184
  %201 = vst [vmem:[%s3 + $0x3c] sm:$0xf] %v185
  // Predicated region
  $region14: #{gcn_forward.13} parent=0 // pred_check
    _
  $region15: #{gcn_forward.13} parent=0 // pred_check_branch
    %203 = sbr.rel (0) target = $region17
  $region16: #{gcn_forward.13} parent=0 // pred_region
    _
  $region17: #{gcn_forward.13} parent=0 // pred_fallthru
    _
  // Predicated region
  $region18: #{gcn_forward.13} parent=0 // pred_check
    _
  $region19: #{gcn_forward.13} parent=0 // pred_check_branch
    %205 = sbr.rel (0) target = $region21
  $region20: #{gcn_forward.13} parent=0 // pred_region
    _
  $region21: #{gcn_forward.13} parent=0 // pred_fallthru
    _

// kernel: gcn_forward.12
$region0: #{gcn_forward.12}
  #allocation0 [shape = 'u32[]', space=smem, size = 0x4, offset = 0x4, fixed_abs, tag = 'smem constant byte address 0x4 - core index']
  #allocation1 [shape = 'u32[72,128]{1,0:T(1,128)}', space=vmem, size = 0x9000, scoped, tag = 'internal scratch']
  #allocation2 [shape = 'f32[128,8]{1,0:T(8,128)}', space=vmem, size = 0x10000, scoped, tag = 'scratch operand']
  %s0 = inlined_call_operand.vmem [shape: bf16[128,128], index: 0, kind: input, shape index: {}]
  %s1 = inlined_call_operand.vmem [shape: bf16[128,8], index: 1, kind: input, shape index: {}]
  %s2 = inlined_call_operand.vmem [shape: f32[1,8], index: 2, kind: input, shape index: {}]
  %s3 = inlined_call_operand.vmem [shape: bf16[128,8], index: 3, kind: output, shape index: {}]
  %s4 = sld [smem:[#allocation0]]
  $region30: #{gcn_forward.12} parent=0
    _
  %s6 = ssub.s32 1, %s4
  %s7 = scalar_select 0, %s6, %s4
  // Predicated region
  $region2: #{gcn_forward.12} parent=0 // pred_check
    _
  $region3: #{gcn_forward.12} parent=0 // pred_check_branch
    %9 = sbr.rel (0) target = $region5
  $region4: #{gcn_forward.12} parent=0 // pred_region
    _
  $region5: #{gcn_forward.12} parent=0 // pred_fallthru
    _
  // Predicated region
  $region6: #{gcn_forward.12} parent=0 // pred_check
    _
  $region7: #{gcn_forward.12} parent=0 // pred_check_branch
    %11 = sbr.rel (0) target = $region9
  $region8: #{gcn_forward.12} parent=0 // pred_region
    _
  $region9: #{gcn_forward.12} parent=0 // pred_fallthru
    _
  // Predicated region
  $region10: #{gcn_forward.12} parent=0 // pred_check
    _
  $region11: #{gcn_forward.12} parent=0 // pred_check_branch
    %13 = sbr.rel (0) target = $region13
  $region12: #{gcn_forward.12} parent=0 // pred_region
    _
  $region13: #{gcn_forward.12} parent=0 // pred_fallthru
    _
  %p14 = scmp.eq.s32.totalorder 0, 0
  // Predicated region
  $region14: #{gcn_forward.12} parent=0 // pred_check
    %p15 = pneg %p14
  $region15: #{gcn_forward.12} parent=0 // pred_check_branch
    %17 = sbr.rel (%p15) target = $region17
  $region16: #{gcn_forward.12} parent=0 // pred_region
    %vm18 = vcmask 64512
    %19 = vst.msk [vmem:[#allocation2] sm:$0xff] %vm18, 0.0
    %20 = vst.msk [vmem:[#allocation2 + $0x8] sm:$0xff] %vm18, 0.0
    %21 = vst.msk [vmem:[#allocation2 + $0x10] sm:$0xff] %vm18, 0.0
    %22 = vst.msk [vmem:[#allocation2 + $0x18] sm:$0xff] %vm18, 0.0
    %23 = vst.msk [vmem:[#allocation2 + $0x20] sm:$0xff] %vm18, 0.0
    %24 = vst.msk [vmem:[#allocation2 + $0x28] sm:$0xff] %vm18, 0.0
    %25 = vst.msk [vmem:[#allocation2 + $0x30] sm:$0xff] %vm18, 0.0
    %26 = vst.msk [vmem:[#allocation2 + $0x38] sm:$0xff] %vm18, 0.0
    %27 = vst.msk [vmem:[#allocation2 + $0x40] sm:$0xff] %vm18, 0.0
    %28 = vst.msk [vmem:[#allocation2 + $0x48] sm:$0xff] %vm18, 0.0
    %29 = vst.msk [vmem:[#allocation2 + $0x50] sm:$0xff] %vm18, 0.0
    %30 = vst.msk [vmem:[#allocation2 + $0x58] sm:$0xff] %vm18, 0.0
    %31 = vst.msk [vmem:[#allocation2 + $0x60] sm:$0xff] %vm18, 0.0
    %32 = vst.msk [vmem:[#allocation2 + $0x68] sm:$0xff] %vm18, 0.0
    %33 = vst.msk [vmem:[#allocation2 + $0x70] sm:$0xff] %vm18, 0.0
    %34 = vst.msk [vmem:[#allocation2 + $0x78] sm:$0xff] %vm18, 0.0
  $region17: #{gcn_forward.12} parent=0 // pred_fallthru
    _
  %s35 = smul.u32 0, 128
  %s36 = sshra.s32 %s35, 3
  %s37 = sand.u32 %s35, 7
  %s38 = smul.addr %s36, 4
  %s39 = scalar_lea.vmem %s1, %s38
  %v40 = vld [vmem:[%s39] sm:$0xf]
  %v41 = vld [vmem:[%s39 + $0x4] sm:$0xf]
  %v42 = vld [vmem:[%s39 + $0x8] sm:$0xf]
  %v43 = vld [vmem:[%s39 + $0xc] sm:$0xf]
  %v44 = vld [vmem:[%s39 + $0x10] sm:$0xf]
  %v45 = vld [vmem:[%s39 + $0x14] sm:$0xf]
  %v46 = vld [vmem:[%s39 + $0x18] sm:$0xf]
  %v47 = vld [vmem:[%s39 + $0x1c] sm:$0xf]
  %v48 = vld [vmem:[%s39 + $0x20] sm:$0xf]
  %v49 = vld [vmem:[%s39 + $0x24] sm:$0xf]
  %v50 = vld [vmem:[%s39 + $0x28] sm:$0xf]
  %v51 = vld [vmem:[%s39 + $0x2c] sm:$0xf]
  %v52 = vld [vmem:[%s39 + $0x30] sm:$0xf]
  %v53 = vld [vmem:[%s39 + $0x34] sm:$0xf]
  %v54 = vld [vmem:[%s39 + $0x38] sm:$0xf]
  %v55 = vld [vmem:[%s39 + $0x3c] sm:$0xf]
  %v56 = vld [vmem:[#allocation2] sm:$0xff]
  %v57 = vld [vmem:[#allocation2 + $0x8] sm:$0xff]
  %v58 = vld [vmem:[#allocation2 + $0x10] sm:$0xff]
  %v59 = vld [vmem:[#allocation2 + $0x18] sm:$0xff]
  %v60 = vld [vmem:[#allocation2 + $0x20] sm:$0xff]
  %v61 = vld [vmem:[#allocation2 + $0x28] sm:$0xff]
  %v62 = vld [vmem:[#allocation2 + $0x30] sm:$0xff]
  %v63 = vld [vmem:[#allocation2 + $0x38] sm:$0xff]
  %v64 = vld [vmem:[#allocation2 + $0x40] sm:$0xff]
  %v65 = vld [vmem:[#allocation2 + $0x48] sm:$0xff]
  %v66 = vld [vmem:[#allocation2 + $0x50] sm:$0xff]
  %v67 = vld [vmem:[#allocation2 + $0x58] sm:$0xff]
  %v68 = vld [vmem:[#allocation2 + $0x60] sm:$0xff]
  %v69 = vld [vmem:[#allocation2 + $0x68] sm:$0xff]
  %v70 = vld [vmem:[#allocation2 + $0x70] sm:$0xff]
  %v71 = vld [vmem:[#allocation2 + $0x78] sm:$0xff]
  %v72 = vld [vmem:[%s0] sm:$0xf]
  %v73 = vld [vmem:[%s0 + $0x4] sm:$0xf]
  %v74 = vld [vmem:[%s0 + $0x8] sm:$0xf]
  %v75 = vld [vmem:[%s0 + $0xc] sm:$0xf]
  %v76 = vld [vmem:[%s0 + $0x10] sm:$0xf]
  %v77 = vld [vmem:[%s0 + $0x14] sm:$0xf]
  %v78 = vld [vmem:[%s0 + $0x18] sm:$0xf]
  %v79 = vld [vmem:[%s0 + $0x1c] sm:$0xf]
  %v80 = vld [vmem:[%s0 + $0x20] sm:$0xf]
  %v81 = vld [vmem:[%s0 + $0x24] sm:$0xf]
  %v82 = vld [vmem:[%s0 + $0x28] sm:$0xf]
  %v83 = vld [vmem:[%s0 + $0x2c] sm:$0xf]
  %v84 = vld [vmem:[%s0 + $0x30] sm:$0xf]
  %v85 = vld [vmem:[%s0 + $0x34] sm:$0xf]
  %v86 = vld [vmem:[%s0 + $0x38] sm:$0xf]
  %v87 = vld [vmem:[%s0 + $0x3c] sm:$0xf]
  %v104 = vunpack.c.l.b16 %v72
  %v105 = vunpack.c.l.b16 %v73
  %v106 = vunpack.c.l.b16 %v74
  %v107 = vunpack.c.l.b16 %v75
  %v108 = vunpack.c.l.b16 %v76
  %v109 = vunpack.c.l.b16 %v77
  %v110 = vunpack.c.l.b16 %v78
  %v111 = vunpack.c.l.b16 %v79
  %v112 = vunpack.c.l.b16 %v80
  %v113 = vunpack.c.l.b16 %v81
  %v114 = vunpack.c.l.b16 %v82
  %v115 = vunpack.c.l.b16 %v83
  %v116 = vunpack.c.l.b16 %v84
  %v117 = vunpack.c.l.b16 %v85
  %v118 = vunpack.c.l.b16 %v86
  %v119 = vunpack.c.l.b16 %v87
  %v120 = vpack.c.b16 %v105, %v104
  %v121 = vpack.c.b16 %v107, %v106
  %v122 = vpack.c.b16 %v109, %v108
  %v123 = vpack.c.b16 %v111, %v110
  %v124 = vpack.c.b16 %v113, %v112
  %v125 = vpack.c.b16 %v115, %v114
  %v126 = vpack.c.b16 %v117, %v116
  %v127 = vpack.c.b16 %v119, %v118
  %v152 = vunpack.c.l.b16 %v40
  %v153 = vunpack.c.l.b16 %v41
  %v154 = vunpack.c.l.b16 %v42
  %v155 = vunpack.c.l.b16 %v43
  %v156 = vunpack.c.l.b16 %v44
  %v157 = vunpack.c.l.b16 %v45
  %v158 = vunpack.c.l.b16 %v46
  %v159 = vunpack.c.l.b16 %v47
  %v160 = vunpack.c.l.b16 %v48
  %v161 = vunpack.c.l.b16 %v49
  %v162 = vunpack.c.l.b16 %v50
  %v163 = vunpack.c.l.b16 %v51
  %v164 = vunpack.c.l.b16 %v52
  %v165 = vunpack.c.l.b16 %v53
  %v166 = vunpack.c.l.b16 %v54
  %v167 = vunpack.c.l.b16 %v55
  %v168 = vpack.c.b16 %v153, %v152
  %v169 = vpack.c.b16 %v155, %v154
  %v170 = vpack.c.b16 %v157, %v156
  %v171 = vpack.c.b16 %v159, %v158
  %v172 = vpack.c.b16 %v161, %v160
  %v173 = vpack.c.b16 %v163, %v162
  %v174 = vpack.c.b16 %v165, %v164
  %v175 = vpack.c.b16 %v167, %v166
  %184 = vmatpush.bf16.msra.mxu0 %v175
  %185 = vmatpush.bf16.msra.mxu0 %v174
  %186 = vmatpush.bf16.msra.mxu0 %v173
  %187 = vmatpush.bf16.msra.mxu0 %v172
  %188 = vmatpush.bf16.msra.mxu0 %v171
  %189 = vmatpush.bf16.msra.mxu0 %v170
  %190 = vmatpush.bf16.msra.mxu0 %v169
  %191 = vmatpush.bf16.msra.mxu0 %v168
  %192 = vmatmul.bf16.gmra.mxu0 %v120
  %v193 = vpop.f32.mrf.mxu0
  %v194 = vadd.f32 0.0, %v193
  %v195 = vpop.f32.mrf.mxu0
  %v196 = vadd.f32 0.0, %v195
  %197 = vmatmul.bf16.gmra.mxu0 %v121
  %v198 = vpop.f32.mrf.mxu0
  %v199 = vadd.f32 0.0, %v198
  %v200 = vpop.f32.mrf.mxu0
  %v201 = vadd.f32 0.0, %v200
  %202 = vmatmul.bf16.gmra.mxu0 %v122
  %v203 = vpop.f32.mrf.mxu0
  %v204 = vadd.f32 0.0, %v203
  %v205 = vpop.f32.mrf.mxu0
  %v206 = vadd.f32 0.0, %v205
  %207 = vmatmul.bf16.gmra.mxu0 %v123
  %v208 = vpop.f32.mrf.mxu0
  %v209 = vadd.f32 0.0, %v208
  %v210 = vpop.f32.mrf.mxu0
  %v211 = vadd.f32 0.0, %v210
  %212 = vmatmul.bf16.gmra.mxu0 %v124
  %v213 = vpop.f32.mrf.mxu0
  %v214 = vadd.f32 0.0, %v213
  %v215 = vpop.f32.mrf.mxu0
  %v216 = vadd.f32 0.0, %v215
  %217 = vmatmul.bf16.gmra.mxu0 %v125
  %v218 = vpop.f32.mrf.mxu0
  %v219 = vadd.f32 0.0, %v218
  %v220 = vpop.f32.mrf.mxu0
  %v221 = vadd.f32 0.0, %v220
  %222 = vmatmul.bf16.gmra.mxu0 %v126
  %v223 = vpop.f32.mrf.mxu0
  %v224 = vadd.f32 0.0, %v223
  %v225 = vpop.f32.mrf.mxu0
  %v226 = vadd.f32 0.0, %v225
  %227 = vmatmul.bf16.gmra.mxu0 %v127
  %v228 = vpop.f32.mrf.mxu0
  %v229 = vadd.f32 0.0, %v228
  %v230 = vpop.f32.mrf.mxu0
  %v231 = vadd.f32 0.0, %v230
  %232 = vdwg.mxu0
  %v233 = vadd.f32 %v56, %v194
  %v234 = vadd.f32 %v57, %v196
  %v235 = vadd.f32 %v58, %v199
  %v236 = vadd.f32 %v59, %v201
  %v237 = vadd.f32 %v60, %v204
  %v238 = vadd.f32 %v61, %v206
  %v239 = vadd.f32 %v62, %v209
  %v240 = vadd.f32 %v63, %v211
  %v241 = vadd.f32 %v64, %v214
  %v242 = vadd.f32 %v65, %v216
  %v243 = vadd.f32 %v66, %v219
  %v244 = vadd.f32 %v67, %v221
  %v245 = vadd.f32 %v68, %v224
  %v246 = vadd.f32 %v69, %v226
  %v247 = vadd.f32 %v70, %v229
  %v248 = vadd.f32 %v71, %v231
  %vm249 = vcmask 64512
  %250 = vst.msk [vmem:[#allocation2] sm:$0xff] %vm249, %v233
  %251 = vst.msk [vmem:[#allocation2 + $0x8] sm:$0xff] %vm249, %v234
  %252 = vst.msk [vmem:[#allocation2 + $0x10] sm:$0xff] %vm249, %v235
  %253 = vst.msk [vmem:[#allocation2 + $0x18] sm:$0xff] %vm249, %v236
  %254 = vst.msk [vmem:[#allocation2 + $0x20] sm:$0xff] %vm249, %v237
  %255 = vst.msk [vmem:[#allocation2 + $0x28] sm:$0xff] %vm249, %v238
  %256 = vst.msk [vmem:[#allocation2 + $0x30] sm:$0xff] %vm249, %v239
  %257 = vst.msk [vmem:[#allocation2 + $0x38] sm:$0xff] %vm249, %v240
  %258 = vst.msk [vmem:[#allocation2 + $0x40] sm:$0xff] %vm249, %v241
  %259 = vst.msk [vmem:[#allocation2 + $0x48] sm:$0xff] %vm249, %v242
  %260 = vst.msk [vmem:[#allocation2 + $0x50] sm:$0xff] %vm249, %v243
  %261 = vst.msk [vmem:[#allocation2 + $0x58] sm:$0xff] %vm249, %v244
  %262 = vst.msk [vmem:[#allocation2 + $0x60] sm:$0xff] %vm249, %v245
  %263 = vst.msk [vmem:[#allocation2 + $0x68] sm:$0xff] %vm249, %v246
  %264 = vst.msk [vmem:[#allocation2 + $0x70] sm:$0xff] %vm249, %v247
  %265 = vst.msk [vmem:[#allocation2 + $0x78] sm:$0xff] %vm249, %v248
  // Predicated region
  $region18: #{gcn_forward.12} parent=0 // pred_check
    %p266 = pneg %p14
  $region19: #{gcn_forward.12} parent=0 // pred_check_branch
    %268 = sbr.rel (%p266) target = $region21
  $region20: #{gcn_forward.12} parent=0 // pred_region
    %v269 = vld [vmem:[#allocation2] sm:$0xff]
    %v270 = vld [vmem:[#allocation2 + $0x8] sm:$0xff]
    %v271 = vld [vmem:[#allocation2 + $0x10] sm:$0xff]
    %v272 = vld [vmem:[#allocation2 + $0x18] sm:$0xff]
    %v273 = vld [vmem:[#allocation2 + $0x20] sm:$0xff]
    %v274 = vld [vmem:[#allocation2 + $0x28] sm:$0xff]
    %v275 = vld [vmem:[#allocation2 + $0x30] sm:$0xff]
    %v276 = vld [vmem:[#allocation2 + $0x38] sm:$0xff]
    %v277 = vld [vmem:[#allocation2 + $0x40] sm:$0xff]
    %v278 = vld [vmem:[#allocation2 + $0x48] sm:$0xff]
    %v279 = vld [vmem:[#allocation2 + $0x50] sm:$0xff]
    %v280 = vld [vmem:[#allocation2 + $0x58] sm:$0xff]
    %v281 = vld [vmem:[#allocation2 + $0x60] sm:$0xff]
    %v282 = vld [vmem:[#allocation2 + $0x68] sm:$0xff]
    %v283 = vld [vmem:[#allocation2 + $0x70] sm:$0xff]
    %v284 = vld [vmem:[#allocation2 + $0x78] sm:$0xff]
    %v285 = vld [vmem:[%s2] sm:$0x1]
    %v287 = vperm.slane %v285, 0
    %v289 = vadd.f32 %v269, %v287
    %v290 = vadd.f32 %v270, %v287
    %v291 = vadd.f32 %v271, %v287
    %v292 = vadd.f32 %v272, %v287
    %v293 = vadd.f32 %v273, %v287
    %v294 = vadd.f32 %v274, %v287
    %v295 = vadd.f32 %v275, %v287
    %v296 = vadd.f32 %v276, %v287
    %v297 = vadd.f32 %v277, %v287
    %v298 = vadd.f32 %v278, %v287
    %v299 = vadd.f32 %v279, %v287
    %v300 = vadd.f32 %v280, %v287
    %v301 = vadd.f32 %v281, %v287
    %v302 = vadd.f32 %v282, %v287
    %v303 = vadd.f32 %v283, %v287
    %v304 = vadd.f32 %v284, %v287
    %v305 = vpack.c.bf16 %v289, %v289
    %v306 = vpack.c.bf16 %v290, %v290
    %v307 = vpack.c.bf16 %v291, %v291
    %v308 = vpack.c.bf16 %v292, %v292
    %v309 = vpack.c.bf16 %v293, %v293
    %v310 = vpack.c.bf16 %v294, %v294
    %v311 = vpack.c.bf16 %v295, %v295
    %v312 = vpack.c.bf16 %v296, %v296
    %v313 = vpack.c.bf16 %v297, %v297
    %v314 = vpack.c.bf16 %v298, %v298
    %v315 = vpack.c.bf16 %v299, %v299
    %v316 = vpack.c.bf16 %v300, %v300
    %v317 = vpack.c.bf16 %v301, %v301
    %v318 = vpack.c.bf16 %v302, %v302
    %v319 = vpack.c.bf16 %v303, %v303
    %v320 = vpack.c.bf16 %v304, %v304
    %vm321 = vcmask 60416
    %322 = vst.msk [vmem:[%s3] sm:$0xf] %vm321, %v305
    %323 = vst.msk [vmem:[%s3 + $0x4] sm:$0xf] %vm321, %v306
    %324 = vst.msk [vmem:[%s3 + $0x8] sm:$0xf] %vm321, %v307
    %325 = vst.msk [vmem:[%s3 + $0xc] sm:$0xf] %vm321, %v308
    %326 = vst.msk [vmem:[%s3 + $0x10] sm:$0xf] %vm321, %v309
    %327 = vst.msk [vmem:[%s3 + $0x14] sm:$0xf] %vm321, %v310
    %328 = vst.msk [vmem:[%s3 + $0x18] sm:$0xf] %vm321, %v311
    %329 = vst.msk [vmem:[%s3 + $0x1c] sm:$0xf] %vm321, %v312
    %330 = vst.msk [vmem:[%s3 + $0x20] sm:$0xf] %vm321, %v313
    %331 = vst.msk [vmem:[%s3 + $0x24] sm:$0xf] %vm321, %v314
    %332 = vst.msk [vmem:[%s3 + $0x28] sm:$0xf] %vm321, %v315
    %333 = vst.msk [vmem:[%s3 + $0x2c] sm:$0xf] %vm321, %v316
    %334 = vst.msk [vmem:[%s3 + $0x30] sm:$0xf] %vm321, %v317
    %335 = vst.msk [vmem:[%s3 + $0x34] sm:$0xf] %vm321, %v318
    %336 = vst.msk [vmem:[%s3 + $0x38] sm:$0xf] %vm321, %v319
    %337 = vst.msk [vmem:[%s3 + $0x3c] sm:$0xf] %vm321, %v320
  $region21: #{gcn_forward.12} parent=0 // pred_fallthru
    _
  // Predicated region
  $region22: #{gcn_forward.12} parent=0 // pred_check
    _
  $region23: #{gcn_forward.12} parent=0 // pred_check_branch
    %339 = sbr.rel (0) target = $region25
  $region24: #{gcn_forward.12} parent=0 // pred_region
    _
  $region25: #{gcn_forward.12} parent=0 // pred_fallthru
    _
  // Predicated region
  $region26: #{gcn_forward.12} parent=0 // pred_check
    _
  $region27: #{gcn_forward.12} parent=0 // pred_check_branch
    %341 = sbr.rel (0) target = $region29
  $region28: #{gcn_forward.12} parent=0 // pred_region
    _
  $region29: #{gcn_forward.12} parent=0 // pred_fallthru
    _

// kernel: gcn_forward.14
$region0: #{gcn_forward.14}
  #allocation0 [shape = 'u32[]', space=smem, size = 0x4, offset = 0x4, fixed_abs, tag = 'smem constant byte address 0x4 - core index']
  #allocation1 [shape = 'u32[72,128]{1,0:T(1,128)}', space=vmem, size = 0x9000, scoped, tag = 'internal scratch']
  %s0 = inlined_call_operand.vmem [shape: bf16[128,128], index: 0, kind: input, shape index: {}]
  %s1 = inlined_call_operand.vmem [shape: bf16[128,128], index: 1, kind: input, shape index: {}]
  %s2 = inlined_call_operand.vmem [shape: f32[1,128], index: 2, kind: input, shape index: {}]
  %s3 = inlined_call_operand.vmem [shape: bf16[128,128], index: 3, kind: output, shape index: {}]
  %s4 = sld [smem:[#allocation0]]
  $region22: #{gcn_forward.14} parent=0
    _
  %s6 = ssub.s32 1, %s4
  %s7 = scalar_select 0, %s6, %s4
  // Predicated region
  $region2: #{gcn_forward.14} parent=0 // pred_check
    _
  $region3: #{gcn_forward.14} parent=0 // pred_check_branch
    %9 = sbr.rel (0) target = $region5
  $region4: #{gcn_forward.14} parent=0 // pred_region
    _
  $region5: #{gcn_forward.14} parent=0 // pred_fallthru
    _
  // Predicated region
  $region6: #{gcn_forward.14} parent=0 // pred_check
    _
  $region7: #{gcn_forward.14} parent=0 // pred_check_branch
    %11 = sbr.rel (0) target = $region9
  $region8: #{gcn_forward.14} parent=0 // pred_region
    _
  $region9: #{gcn_forward.14} parent=0 // pred_fallthru
    _
  // Predicated region
  $region10: #{gcn_forward.14} parent=0 // pred_check
    _
  $region11: #{gcn_forward.14} parent=0 // pred_check_branch
    %13 = sbr.rel (0) target = $region13
  $region12: #{gcn_forward.14} parent=0 // pred_region
    _
  $region13: #{gcn_forward.14} parent=0 // pred_fallthru
    _
  %v14 = vld [vmem:[%s0] sm:$0xf]
  %v15 = vld [vmem:[%s0 + $0x4] sm:$0xf]
  %v16 = vld [vmem:[%s0 + $0x8] sm:$0xf]
  %v17 = vld [vmem:[%s0 + $0xc] sm:$0xf]
  %v18 = vld [vmem:[%s0 + $0x10] sm:$0xf]
  %v19 = vld [vmem:[%s0 + $0x14] sm:$0xf]
  %v20 = vld [vmem:[%s0 + $0x18] sm:$0xf]
  %v21 = vld [vmem:[%s0 + $0x1c] sm:$0xf]
  %v22 = vld [vmem:[%s0 + $0x20] sm:$0xf]
  %v23 = vld [vmem:[%s0 + $0x24] sm:$0xf]
  %v24 = vld [vmem:[%s0 + $0x28] sm:$0xf]
  %v25 = vld [vmem:[%s0 + $0x2c] sm:$0xf]
  %v26 = vld [vmem:[%s0 + $0x30] sm:$0xf]
  %v27 = vld [vmem:[%s0 + $0x34] sm:$0xf]
  %v28 = vld [vmem:[%s0 + $0x38] sm:$0xf]
  %v29 = vld [vmem:[%s0 + $0x3c] sm:$0xf]
  %v30 = vld [vmem:[%s1] sm:$0xf]
  %v31 = vld [vmem:[%s1 + $0x4] sm:$0xf]
  %v32 = vld [vmem:[%s1 + $0x8] sm:$0xf]
  %v33 = vld [vmem:[%s1 + $0xc] sm:$0xf]
  %v34 = vld [vmem:[%s1 + $0x10] sm:$0xf]
  %v35 = vld [vmem:[%s1 + $0x14] sm:$0xf]
  %v36 = vld [vmem:[%s1 + $0x18] sm:$0xf]
  %v37 = vld [vmem:[%s1 + $0x1c] sm:$0xf]
  %v38 = vld [vmem:[%s1 + $0x20] sm:$0xf]
  %v39 = vld [vmem:[%s1 + $0x24] sm:$0xf]
  %v40 = vld [vmem:[%s1 + $0x28] sm:$0xf]
  %v41 = vld [vmem:[%s1 + $0x2c] sm:$0xf]
  %v42 = vld [vmem:[%s1 + $0x30] sm:$0xf]
  %v43 = vld [vmem:[%s1 + $0x34] sm:$0xf]
  %v44 = vld [vmem:[%s1 + $0x38] sm:$0xf]
  %v45 = vld [vmem:[%s1 + $0x3c] sm:$0xf]
  %v46 = vld [vmem:[%s2] sm:$0x1]
  %v48 = vperm.slane %v46, 0
  %v66 = vunpack.c.l.b16 %v14
  %v67 = vunpack.c.l.b16 %v15
  %v68 = vunpack.c.l.b16 %v16
  %v69 = vunpack.c.l.b16 %v17
  %v70 = vunpack.c.l.b16 %v18
  %v71 = vunpack.c.l.b16 %v19
  %v72 = vunpack.c.l.b16 %v20
  %v73 = vunpack.c.l.b16 %v21
  %v74 = vunpack.c.l.b16 %v22
  %v75 = vunpack.c.l.b16 %v23
  %v76 = vunpack.c.l.b16 %v24
  %v77 = vunpack.c.l.b16 %v25
  %v78 = vunpack.c.l.b16 %v26
  %v79 = vunpack.c.l.b16 %v27
  %v80 = vunpack.c.l.b16 %v28
  %v81 = vunpack.c.l.b16 %v29
  %v82 = vpack.c.b16 %v67, %v66
  %v83 = vpack.c.b16 %v69, %v68
  %v84 = vpack.c.b16 %v71, %v70
  %v85 = vpack.c.b16 %v73, %v72
  %v86 = vpack.c.b16 %v75, %v74
  %v87 = vpack.c.b16 %v77, %v76
  %v88 = vpack.c.b16 %v79, %v78
  %v89 = vpack.c.b16 %v81, %v80
  %v114 = vunpack.c.l.b16 %v30
  %v115 = vunpack.c.l.b16 %v31
  %v116 = vunpack.c.l.b16 %v32
  %v117 = vunpack.c.l.b16 %v33
  %v118 = vunpack.c.l.b16 %v34
  %v119 = vunpack.c.l.b16 %v35
  %v120 = vunpack.c.l.b16 %v36
  %v121 = vunpack.c.l.b16 %v37
  %v122 = vunpack.c.l.b16 %v38
  %v123 = vunpack.c.l.b16 %v39
  %v124 = vunpack.c.l.b16 %v40
  %v125 = vunpack.c.l.b16 %v41
  %v126 = vunpack.c.l.b16 %v42
  %v127 = vunpack.c.l.b16 %v43
  %v128 = vunpack.c.l.b16 %v44
  %v129 = vunpack.c.l.b16 %v45
  %v130 = vpack.c.b16 %v115, %v114
  %v131 = vpack.c.b16 %v117, %v116
  %v132 = vpack.c.b16 %v119, %v118
  %v133 = vpack.c.b16 %v121, %v120
  %v134 = vpack.c.b16 %v123, %v122
  %v135 = vpack.c.b16 %v125, %v124
  %v136 = vpack.c.b16 %v127, %v126
  %v137 = vpack.c.b16 %v129, %v128
  %146 = vmatpush.bf16.msra.mxu0 %v137
  %147 = vmatpush.bf16.msra.mxu0 %v136
  %148 = vmatpush.bf16.msra.mxu0 %v135
  %149 = vmatpush.bf16.msra.mxu0 %v134
  %150 = vmatpush.bf16.msra.mxu0 %v133
  %151 = vmatpush.bf16.msra.mxu0 %v132
  %152 = vmatpush.bf16.msra.mxu0 %v131
  %153 = vmatpush.bf16.msra.mxu0 %v130
  %154 = vmatmul.bf16.gmra.mxu0 %v82
  %v155 = vpop.f32.mrf.mxu0
  %v156 = vadd.f32 %v48, %v155
  %v157 = vpop.f32.mrf.mxu0
  %v158 = vadd.f32 %v48, %v157
  %159 = vmatmul.bf16.gmra.mxu0 %v83
  %v160 = vpop.f32.mrf.mxu0
  %v161 = vadd.f32 %v48, %v160
  %v162 = vpop.f32.mrf.mxu0
  %v163 = vadd.f32 %v48, %v162
  %164 = vmatmul.bf16.gmra.mxu0 %v84
  %v165 = vpop.f32.mrf.mxu0
  %v166 = vadd.f32 %v48, %v165
  %v167 = vpop.f32.mrf.mxu0
  %v168 = vadd.f32 %v48, %v167
  %169 = vmatmul.bf16.gmra.mxu0 %v85
  %v170 = vpop.f32.mrf.mxu0
  %v171 = vadd.f32 %v48, %v170
  %v172 = vpop.f32.mrf.mxu0
  %v173 = vadd.f32 %v48, %v172
  %174 = vmatmul.bf16.gmra.mxu0 %v86
  %v175 = vpop.f32.mrf.mxu0
  %v176 = vadd.f32 %v48, %v175
  %v177 = vpop.f32.mrf.mxu0
  %v178 = vadd.f32 %v48, %v177
  %179 = vmatmul.bf16.gmra.mxu0 %v87
  %v180 = vpop.f32.mrf.mxu0
  %v181 = vadd.f32 %v48, %v180
  %v182 = vpop.f32.mrf.mxu0
  %v183 = vadd.f32 %v48, %v182
  %184 = vmatmul.bf16.gmra.mxu0 %v88
  %v185 = vpop.f32.mrf.mxu0
  %v186 = vadd.f32 %v48, %v185
  %v187 = vpop.f32.mrf.mxu0
  %v188 = vadd.f32 %v48, %v187
  %189 = vmatmul.bf16.gmra.mxu0 %v89
  %v190 = vpop.f32.mrf.mxu0
  %v191 = vadd.f32 %v48, %v190
  %v192 = vpop.f32.mrf.mxu0
  %v193 = vadd.f32 %v48, %v192
  %194 = vdwg.mxu0
  %v195 = vpack.c.bf16 %v156, %v156
  %v196 = vpack.c.bf16 %v158, %v158
  %v197 = vpack.c.bf16 %v161, %v161
  %v198 = vpack.c.bf16 %v163, %v163
  %v199 = vpack.c.bf16 %v166, %v166
  %v200 = vpack.c.bf16 %v168, %v168
  %v201 = vpack.c.bf16 %v171, %v171
  %v202 = vpack.c.bf16 %v173, %v173
  %v203 = vpack.c.bf16 %v176, %v176
  %v204 = vpack.c.bf16 %v178, %v178
  %v205 = vpack.c.bf16 %v181, %v181
  %v206 = vpack.c.bf16 %v183, %v183
  %v207 = vpack.c.bf16 %v186, %v186
  %v208 = vpack.c.bf16 %v188, %v188
  %v209 = vpack.c.bf16 %v191, %v191
  %v210 = vpack.c.bf16 %v193, %v193
  %211 = vst [vmem:[%s3] sm:$0xf] %v195
  %212 = vst [vmem:[%s3 + $0x4] sm:$0xf] %v196
  %213 = vst [vmem:[%s3 + $0x8] sm:$0xf] %v197
  %214 = vst [vmem:[%s3 + $0xc] sm:$0xf] %v198
  %215 = vst [vmem:[%s3 + $0x10] sm:$0xf] %v199
  %216 = vst [vmem:[%s3 + $0x14] sm:$0xf] %v200
  %217 = vst [vmem:[%s3 + $0x18] sm:$0xf] %v201
  %218 = vst [vmem:[%s3 + $0x1c] sm:$0xf] %v202
  %219 = vst [vmem:[%s3 + $0x20] sm:$0xf] %v203
  %220 = vst [vmem:[%s3 + $0x24] sm:$0xf] %v204
  %221 = vst [vmem:[%s3 + $0x28] sm:$0xf] %v205
  %222 = vst [vmem:[%s3 + $0x2c] sm:$0xf] %v206
  %223 = vst [vmem:[%s3 + $0x30] sm:$0xf] %v207
  %224 = vst [vmem:[%s3 + $0x34] sm:$0xf] %v208
  %225 = vst [vmem:[%s3 + $0x38] sm:$0xf] %v209
  %226 = vst [vmem:[%s3 + $0x3c] sm:$0xf] %v210
  // Predicated region
  $region14: #{gcn_forward.14} parent=0 // pred_check
    _
  $region15: #{gcn_forward.14} parent=0 // pred_check_branch
    %228 = sbr.rel (0) target = $region17
  $region16: #{gcn_forward.14} parent=0 // pred_region
    _
  $region17: #{gcn_forward.14} parent=0 // pred_fallthru
    _
  // Predicated region
  $region18: #{gcn_forward.14} parent=0 // pred_check
    _
  $region19: #{gcn_forward.14} parent=0 // pred_check_branch
    %230 = sbr.rel (0) target = $region21
  $region20: #{gcn_forward.14} parent=0 // pred_region
    _
  $region21: #{gcn_forward.14} parent=0 // pred_fallthru
    _

// kernel: gcn_forward.15
$region0: #{gcn_forward.15}
  #allocation0 [shape = 'u32[]', space=smem, size = 0x4, offset = 0x4, fixed_abs, tag = 'smem constant byte address 0x4 - core index']
  #allocation1 [shape = 'u32[72,128]{1,0:T(1,128)}', space=vmem, size = 0x9000, scoped, tag = 'internal scratch']
  #allocation2 [shape = 'f32[128,128]{1,0:T(8,128)}', space=vmem, size = 0x10000, scoped, tag = 'scratch operand']
  %s0 = inlined_call_operand.vmem [shape: bf16[128,128], index: 0, kind: input, shape index: {}]
  %s1 = inlined_call_operand.vmem [shape: bf16[128,128], index: 1, kind: input, shape index: {}]
  %s2 = inlined_call_operand.vmem [shape: f32[1,128], index: 2, kind: input, shape index: {}]
  %s3 = inlined_call_operand.vmem [shape: bf16[128,128], index: 3, kind: output, shape index: {}]
  %s4 = sld [smem:[#allocation0]]
  $region30: #{gcn_forward.15} parent=0
    _
  %s6 = ssub.s32 1, %s4
  %s7 = scalar_select 0, %s6, %s4
  // Predicated region
  $region2: #{gcn_forward.15} parent=0 // pred_check
    _
  $region3: #{gcn_forward.15} parent=0 // pred_check_branch
    %9 = sbr.rel (0) target = $region5
  $region4: #{gcn_forward.15} parent=0 // pred_region
    _
  $region5: #{gcn_forward.15} parent=0 // pred_fallthru
    _
  // Predicated region
  $region6: #{gcn_forward.15} parent=0 // pred_check
    _
  $region7: #{gcn_forward.15} parent=0 // pred_check_branch
    %11 = sbr.rel (0) target = $region9
  $region8: #{gcn_forward.15} parent=0 // pred_region
    _
  $region9: #{gcn_forward.15} parent=0 // pred_fallthru
    _
  // Predicated region
  $region10: #{gcn_forward.15} parent=0 // pred_check
    _
  $region11: #{gcn_forward.15} parent=0 // pred_check_branch
    %13 = sbr.rel (0) target = $region13
  $region12: #{gcn_forward.15} parent=0 // pred_region
    _
  $region13: #{gcn_forward.15} parent=0 // pred_fallthru
    _
  %p14 = scmp.eq.s32.totalorder 0, 0
  // Predicated region
  $region14: #{gcn_forward.15} parent=0 // pred_check
    %p15 = pneg %p14
  $region15: #{gcn_forward.15} parent=0 // pred_check_branch
    %17 = sbr.rel (%p15) target = $region17
  $region16: #{gcn_forward.15} parent=0 // pred_region
    %18 = vst [vmem:[#allocation2] sm:$0xff] 0.0
    %19 = vst [vmem:[#allocation2 + $0x8] sm:$0xff] 0.0
    %20 = vst [vmem:[#allocation2 + $0x10] sm:$0xff] 0.0
    %21 = vst [vmem:[#allocation2 + $0x18] sm:$0xff] 0.0
    %22 = vst [vmem:[#allocation2 + $0x20] sm:$0xff] 0.0
    %23 = vst [vmem:[#allocation2 + $0x28] sm:$0xff] 0.0
    %24 = vst [vmem:[#allocation2 + $0x30] sm:$0xff] 0.0
    %25 = vst [vmem:[#allocation2 + $0x38] sm:$0xff] 0.0
    %26 = vst [vmem:[#allocation2 + $0x40] sm:$0xff] 0.0
    %27 = vst [vmem:[#allocation2 + $0x48] sm:$0xff] 0.0
    %28 = vst [vmem:[#allocation2 + $0x50] sm:$0xff] 0.0
    %29 = vst [vmem:[#allocation2 + $0x58] sm:$0xff] 0.0
    %30 = vst [vmem:[#allocation2 + $0x60] sm:$0xff] 0.0
    %31 = vst [vmem:[#allocation2 + $0x68] sm:$0xff] 0.0
    %32 = vst [vmem:[#allocation2 + $0x70] sm:$0xff] 0.0
    %33 = vst [vmem:[#allocation2 + $0x78] sm:$0xff] 0.0
  $region17: #{gcn_forward.15} parent=0 // pred_fallthru
    _
  %s34 = smul.u32 0, 128
  %s35 = sshra.s32 %s34, 3
  %s36 = sand.u32 %s34, 7
  %s37 = smul.addr %s35, 4
  %s38 = scalar_lea.vmem %s1, %s37
  %v39 = vld [vmem:[%s38] sm:$0xf]
  %v40 = vld [vmem:[%s38 + $0x4] sm:$0xf]
  %v41 = vld [vmem:[%s38 + $0x8] sm:$0xf]
  %v42 = vld [vmem:[%s38 + $0xc] sm:$0xf]
  %v43 = vld [vmem:[%s38 + $0x10] sm:$0xf]
  %v44 = vld [vmem:[%s38 + $0x14] sm:$0xf]
  %v45 = vld [vmem:[%s38 + $0x18] sm:$0xf]
  %v46 = vld [vmem:[%s38 + $0x1c] sm:$0xf]
  %v47 = vld [vmem:[%s38 + $0x20] sm:$0xf]
  %v48 = vld [vmem:[%s38 + $0x24] sm:$0xf]
  %v49 = vld [vmem:[%s38 + $0x28] sm:$0xf]
  %v50 = vld [vmem:[%s38 + $0x2c] sm:$0xf]
  %v51 = vld [vmem:[%s38 + $0x30] sm:$0xf]
  %v52 = vld [vmem:[%s38 + $0x34] sm:$0xf]
  %v53 = vld [vmem:[%s38 + $0x38] sm:$0xf]
  %v54 = vld [vmem:[%s38 + $0x3c] sm:$0xf]
  %v55 = vld [vmem:[#allocation2] sm:$0xff]
  %v56 = vld [vmem:[#allocation2 + $0x8] sm:$0xff]
  %v57 = vld [vmem:[#allocation2 + $0x10] sm:$0xff]
  %v58 = vld [vmem:[#allocation2 + $0x18] sm:$0xff]
  %v59 = vld [vmem:[#allocation2 + $0x20] sm:$0xff]
  %v60 = vld [vmem:[#allocation2 + $0x28] sm:$0xff]
  %v61 = vld [vmem:[#allocation2 + $0x30] sm:$0xff]
  %v62 = vld [vmem:[#allocation2 + $0x38] sm:$0xff]
  %v63 = vld [vmem:[#allocation2 + $0x40] sm:$0xff]
  %v64 = vld [vmem:[#allocation2 + $0x48] sm:$0xff]
  %v65 = vld [vmem:[#allocation2 + $0x50] sm:$0xff]
  %v66 = vld [vmem:[#allocation2 + $0x58] sm:$0xff]
  %v67 = vld [vmem:[#allocation2 + $0x60] sm:$0xff]
  %v68 = vld [vmem:[#allocation2 + $0x68] sm:$0xff]
  %v69 = vld [vmem:[#allocation2 + $0x70] sm:$0xff]
  %v70 = vld [vmem:[#allocation2 + $0x78] sm:$0xff]
  %v71 = vld [vmem:[%s0] sm:$0xf]
  %v72 = vld [vmem:[%s0 + $0x4] sm:$0xf]
  %v73 = vld [vmem:[%s0 + $0x8] sm:$0xf]
  %v74 = vld [vmem:[%s0 + $0xc] sm:$0xf]
  %v75 = vld [vmem:[%s0 + $0x10] sm:$0xf]
  %v76 = vld [vmem:[%s0 + $0x14] sm:$0xf]
  %v77 = vld [vmem:[%s0 + $0x18] sm:$0xf]
  %v78 = vld [vmem:[%s0 + $0x1c] sm:$0xf]
  %v79 = vld [vmem:[%s0 + $0x20] sm:$0xf]
  %v80 = vld [vmem:[%s0 + $0x24] sm:$0xf]
  %v81 = vld [vmem:[%s0 + $0x28] sm:$0xf]
  %v82 = vld [vmem:[%s0 + $0x2c] sm:$0xf]
  %v83 = vld [vmem:[%s0 + $0x30] sm:$0xf]
  %v84 = vld [vmem:[%s0 + $0x34] sm:$0xf]
  %v85 = vld [vmem:[%s0 + $0x38] sm:$0xf]
  %v86 = vld [vmem:[%s0 + $0x3c] sm:$0xf]
  %v103 = vunpack.c.l.b16 %v71
  %v104 = vunpack.c.l.b16 %v72
  %v105 = vunpack.c.l.b16 %v73
  %v106 = vunpack.c.l.b16 %v74
  %v107 = vunpack.c.l.b16 %v75
  %v108 = vunpack.c.l.b16 %v76
  %v109 = vunpack.c.l.b16 %v77
  %v110 = vunpack.c.l.b16 %v78
  %v111 = vunpack.c.l.b16 %v79
  %v112 = vunpack.c.l.b16 %v80
  %v113 = vunpack.c.l.b16 %v81
  %v114 = vunpack.c.l.b16 %v82
  %v115 = vunpack.c.l.b16 %v83
  %v116 = vunpack.c.l.b16 %v84
  %v117 = vunpack.c.l.b16 %v85
  %v118 = vunpack.c.l.b16 %v86
  %v119 = vpack.c.b16 %v104, %v103
  %v120 = vpack.c.b16 %v106, %v105
  %v121 = vpack.c.b16 %v108, %v107
  %v122 = vpack.c.b16 %v110, %v109
  %v123 = vpack.c.b16 %v112, %v111
  %v124 = vpack.c.b16 %v114, %v113
  %v125 = vpack.c.b16 %v116, %v115
  %v126 = vpack.c.b16 %v118, %v117
  %v151 = vunpack.c.l.b16 %v39
  %v152 = vunpack.c.l.b16 %v40
  %v153 = vunpack.c.l.b16 %v41
  %v154 = vunpack.c.l.b16 %v42
  %v155 = vunpack.c.l.b16 %v43
  %v156 = vunpack.c.l.b16 %v44
  %v157 = vunpack.c.l.b16 %v45
  %v158 = vunpack.c.l.b16 %v46
  %v159 = vunpack.c.l.b16 %v47
  %v160 = vunpack.c.l.b16 %v48
  %v161 = vunpack.c.l.b16 %v49
  %v162 = vunpack.c.l.b16 %v50
  %v163 = vunpack.c.l.b16 %v51
  %v164 = vunpack.c.l.b16 %v52
  %v165 = vunpack.c.l.b16 %v53
  %v166 = vunpack.c.l.b16 %v54
  %v167 = vpack.c.b16 %v152, %v151
  %v168 = vpack.c.b16 %v154, %v153
  %v169 = vpack.c.b16 %v156, %v155
  %v170 = vpack.c.b16 %v158, %v157
  %v171 = vpack.c.b16 %v160, %v159
  %v172 = vpack.c.b16 %v162, %v161
  %v173 = vpack.c.b16 %v164, %v163
  %v174 = vpack.c.b16 %v166, %v165
  %183 = vmatpush.bf16.msra.mxu0 %v174
  %184 = vmatpush.bf16.msra.mxu0 %v173
  %185 = vmatpush.bf16.msra.mxu0 %v172
  %186 = vmatpush.bf16.msra.mxu0 %v171
  %187 = vmatpush.bf16.msra.mxu0 %v170
  %188 = vmatpush.bf16.msra.mxu0 %v169
  %189 = vmatpush.bf16.msra.mxu0 %v168
  %190 = vmatpush.bf16.msra.mxu0 %v167
  %191 = vmatmul.bf16.gmra.mxu0 %v119
  %v192 = vpop.f32.mrf.mxu0
  %v193 = vadd.f32 0.0, %v192
  %v194 = vpop.f32.mrf.mxu0
  %v195 = vadd.f32 0.0, %v194
  %196 = vmatmul.bf16.gmra.mxu0 %v120
  %v197 = vpop.f32.mrf.mxu0
  %v198 = vadd.f32 0.0, %v197
  %v199 = vpop.f32.mrf.mxu0
  %v200 = vadd.f32 0.0, %v199
  %201 = vmatmul.bf16.gmra.mxu0 %v121
  %v202 = vpop.f32.mrf.mxu0
  %v203 = vadd.f32 0.0, %v202
  %v204 = vpop.f32.mrf.mxu0
  %v205 = vadd.f32 0.0, %v204
  %206 = vmatmul.bf16.gmra.mxu0 %v122
  %v207 = vpop.f32.mrf.mxu0
  %v208 = vadd.f32 0.0, %v207
  %v209 = vpop.f32.mrf.mxu0
  %v210 = vadd.f32 0.0, %v209
  %211 = vmatmul.bf16.gmra.mxu0 %v123
  %v212 = vpop.f32.mrf.mxu0
  %v213 = vadd.f32 0.0, %v212
  %v214 = vpop.f32.mrf.mxu0
  %v215 = vadd.f32 0.0, %v214
  %216 = vmatmul.bf16.gmra.mxu0 %v124
  %v217 = vpop.f32.mrf.mxu0
  %v218 = vadd.f32 0.0, %v217
  %v219 = vpop.f32.mrf.mxu0
  %v220 = vadd.f32 0.0, %v219
  %221 = vmatmul.bf16.gmra.mxu0 %v125
  %v222 = vpop.f32.mrf.mxu0
  %v223 = vadd.f32 0.0, %v222
  %v224 = vpop.f32.mrf.mxu0
  %v225 = vadd.f32 0.0, %v224
  %226 = vmatmul.bf16.gmra.mxu0 %v126
  %v227 = vpop.f32.mrf.mxu0
  %v228 = vadd.f32 0.0, %v227
  %v229 = vpop.f32.mrf.mxu0
  %v230 = vadd.f32 0.0, %v229
  %231 = vdwg.mxu0
  %v232 = vadd.f32 %v55, %v193
  %v233 = vadd.f32 %v56, %v195
  %v234 = vadd.f32 %v57, %v198
  %v235 = vadd.f32 %v58, %v200
  %v236 = vadd.f32 %v59, %v203
  %v237 = vadd.f32 %v60, %v205
  %v238 = vadd.f32 %v61, %v208
  %v239 = vadd.f32 %v62, %v210
  %v240 = vadd.f32 %v63, %v213
  %v241 = vadd.f32 %v64, %v215
  %v242 = vadd.f32 %v65, %v218
  %v243 = vadd.f32 %v66, %v220
  %v244 = vadd.f32 %v67, %v223
  %v245 = vadd.f32 %v68, %v225
  %v246 = vadd.f32 %v69, %v228
  %v247 = vadd.f32 %v70, %v230
  %248 = vst [vmem:[#allocation2] sm:$0xff] %v232
  %249 = vst [vmem:[#allocation2 + $0x8] sm:$0xff] %v233
  %250 = vst [vmem:[#allocation2 + $0x10] sm:$0xff] %v234
  %251 = vst [vmem:[#allocation2 + $0x18] sm:$0xff] %v235
  %252 = vst [vmem:[#allocation2 + $0x20] sm:$0xff] %v236
  %253 = vst [vmem:[#allocation2 + $0x28] sm:$0xff] %v237
  %254 = vst [vmem:[#allocation2 + $0x30] sm:$0xff] %v238
  %255 = vst [vmem:[#allocation2 + $0x38] sm:$0xff] %v239
  %256 = vst [vmem:[#allocation2 + $0x40] sm:$0xff] %v240
  %257 = vst [vmem:[#allocation2 + $0x48] sm:$0xff] %v241
  %258 = vst [vmem:[#allocation2 + $0x50] sm:$0xff] %v242
  %259 = vst [vmem:[#allocation2 + $0x58] sm:$0xff] %v243
  %260 = vst [vmem:[#allocation2 + $0x60] sm:$0xff] %v244
  %261 = vst [vmem:[#allocation2 + $0x68] sm:$0xff] %v245
  %262 = vst [vmem:[#allocation2 + $0x70] sm:$0xff] %v246
  %263 = vst [vmem:[#allocation2 + $0x78] sm:$0xff] %v247
  // Predicated region
  $region18: #{gcn_forward.15} parent=0 // pred_check
    %p264 = pneg %p14
  $region19: #{gcn_forward.15} parent=0 // pred_check_branch
    %266 = sbr.rel (%p264) target = $region21
  $region20: #{gcn_forward.15} parent=0 // pred_region
    %v267 = vld [vmem:[#allocation2] sm:$0xff]
    %v268 = vld [vmem:[#allocation2 + $0x8] sm:$0xff]
    %v269 = vld [vmem:[#allocation2 + $0x10] sm:$0xff]
    %v270 = vld [vmem:[#allocation2 + $0x18] sm:$0xff]
    %v271 = vld [vmem:[#allocation2 + $0x20] sm:$0xff]
    %v272 = vld [vmem:[#allocation2 + $0x28] sm:$0xff]
    %v273 = vld [vmem:[#allocation2 + $0x30] sm:$0xff]
    %v274 = vld [vmem:[#allocation2 + $0x38] sm:$0xff]
    %v275 = vld [vmem:[#allocation2 + $0x40] sm:$0xff]
    %v276 = vld [vmem:[#allocation2 + $0x48] sm:$0xff]
    %v277 = vld [vmem:[#allocation2 + $0x50] sm:$0xff]
    %v278 = vld [vmem:[#allocation2 + $0x58] sm:$0xff]
    %v279 = vld [vmem:[#allocation2 + $0x60] sm:$0xff]
    %v280 = vld [vmem:[#allocation2 + $0x68] sm:$0xff]
    %v281 = vld [vmem:[#allocation2 + $0x70] sm:$0xff]
    %v282 = vld [vmem:[#allocation2 + $0x78] sm:$0xff]
    %v283 = vld [vmem:[%s2] sm:$0x1]
    %v285 = vperm.slane %v283, 0
    %v287 = vadd.f32 %v267, %v285
    %v288 = vadd.f32 %v268, %v285
    %v289 = vadd.f32 %v269, %v285
    %v290 = vadd.f32 %v270, %v285
    %v291 = vadd.f32 %v271, %v285
    %v292 = vadd.f32 %v272, %v285
    %v293 = vadd.f32 %v273, %v285
    %v294 = vadd.f32 %v274, %v285
    %v295 = vadd.f32 %v275, %v285
    %v296 = vadd.f32 %v276, %v285
    %v297 = vadd.f32 %v277, %v285
    %v298 = vadd.f32 %v278, %v285
    %v299 = vadd.f32 %v279, %v285
    %v300 = vadd.f32 %v280, %v285
    %v301 = vadd.f32 %v281, %v285
    %v302 = vadd.f32 %v282, %v285
    %v303 = vmax.f32 %v287, 0.0
    %v304 = vmax.f32 %v288, 0.0
    %v305 = vmax.f32 %v289, 0.0
    %v306 = vmax.f32 %v290, 0.0
    %v307 = vmax.f32 %v291, 0.0
    %v308 = vmax.f32 %v292, 0.0
    %v309 = vmax.f32 %v293, 0.0
    %v310 = vmax.f32 %v294, 0.0
    %v311 = vmax.f32 %v295, 0.0
    %v312 = vmax.f32 %v296, 0.0
    %v313 = vmax.f32 %v297, 0.0
    %v314 = vmax.f32 %v298, 0.0
    %v315 = vmax.f32 %v299, 0.0
    %v316 = vmax.f32 %v300, 0.0
    %v317 = vmax.f32 %v301, 0.0
    %v318 = vmax.f32 %v302, 0.0
    %v319 = vpack.c.bf16 %v303, %v303
    %v320 = vpack.c.bf16 %v304, %v304
    %v321 = vpack.c.bf16 %v305, %v305
    %v322 = vpack.c.bf16 %v306, %v306
    %v323 = vpack.c.bf16 %v307, %v307
    %v324 = vpack.c.bf16 %v308, %v308
    %v325 = vpack.c.bf16 %v309, %v309
    %v326 = vpack.c.bf16 %v310, %v310
    %v327 = vpack.c.bf16 %v311, %v311
    %v328 = vpack.c.bf16 %v312, %v312
    %v329 = vpack.c.bf16 %v313, %v313
    %v330 = vpack.c.bf16 %v314, %v314
    %v331 = vpack.c.bf16 %v315, %v315
    %v332 = vpack.c.bf16 %v316, %v316
    %v333 = vpack.c.bf16 %v317, %v317
    %v334 = vpack.c.bf16 %v318, %v318
    %335 = vst [vmem:[%s3] sm:$0xf] %v319
    %336 = vst [vmem:[%s3 + $0x4] sm:$0xf] %v320
    %337 = vst [vmem:[%s3 + $0x8] sm:$0xf] %v321
    %338 = vst [vmem:[%s3 + $0xc] sm:$0xf] %v322
    %339 = vst [vmem:[%s3 + $0x10] sm:$0xf] %v323
    %340 = vst [vmem:[%s3 + $0x14] sm:$0xf] %v324
    %341 = vst [vmem:[%s3 + $0x18] sm:$0xf] %v325
    %342 = vst [vmem:[%s3 + $0x1c] sm:$0xf] %v326
    %343 = vst [vmem:[%s3 + $0x20] sm:$0xf] %v327
    %344 = vst [vmem:[%s3 + $0x24] sm:$0xf] %v328
    %345 = vst [vmem:[%s3 + $0x28] sm:$0xf] %v329
    %346 = vst [vmem:[%s3 + $0x2c] sm:$0xf] %v330
    %347 = vst [vmem:[%s3 + $0x30] sm:$0xf] %v331
    %348 = vst [vmem:[%s3 + $0x34] sm:$0xf] %v332
    %349 = vst [vmem:[%s3 + $0x38] sm:$0xf] %v333
    %350 = vst [vmem:[%s3 + $0x3c] sm:$0xf] %v334
  $region21: #{gcn_forward.15} parent=0 // pred_fallthru
    _
  // Predicated region
  $region22: #{gcn_forward.15} parent=0 // pred_check
    _
  $region23: #{gcn_forward.15} parent=0 // pred_check_branch
    %352 = sbr.rel (0) target = $region25
  $region24: #{gcn_forward.15} parent=0 // pred_region
    _
  $region25: #{gcn_forward.15} parent=0 // pred_fallthru
    _
  // Predicated region
  $region26: #{gcn_forward.15} parent=0 // pred_check
    _
  $region27: #{gcn_forward.15} parent=0 // pred_check_branch
    %354 = sbr.rel (0) target = $region29
  $region28: #{gcn_forward.15} parent=0 // pred_region
    _
  $region29: #{gcn_forward.15} parent=0 // pred_fallthru
    _

// kernel: gcn_forward.23
$region0: #{gcn_forward.23}
  #allocation0 [shape = 'u32[]', space=smem, size = 0x4, offset = 0x4, fixed_abs, tag = 'smem constant byte address 0x4 - core index']
  #allocation1 [shape = 'u32[72,128]{1,0:T(1,128)}', space=vmem, size = 0x9000, scoped, tag = 'internal scratch']
  %s0 = inlined_call_operand.vmem [shape: f32[2,128], index: 0, kind: input, shape index: {}]
  %s1 = inlined_call_operand.vmem [shape: f32[128,64], index: 1, kind: input, shape index: {}]
  %s2 = inlined_call_operand.vmem [shape: f32[1,64], index: 2, kind: input, shape index: {}]
  %s3 = inlined_call_operand.vmem [shape: f32[64,16], index: 3, kind: input, shape index: {}]
  %s4 = inlined_call_operand.vmem [shape: f32[1,16], index: 4, kind: input, shape index: {}]
  %s5 = inlined_call_operand.vmem [shape: f32[16,2], index: 5, kind: input, shape index: {}]
  %s6 = inlined_call_operand.vmem [shape: f32[1,2], index: 6, kind: input, shape index: {}]
  %s7 = inlined_call_operand.hbm [shape: f32[2,2], index: 7, kind: output, shape index: {}]
  %s8 = sld [smem:[#allocation0]]
  $region38: #{gcn_forward.23} parent=0
    _
  %s10 = ssub.s32 1, %s8
  %s11 = scalar_select 0, %s10, %s8
  $region1: #{gcn_forward.23} parent=0
    #allocation2 [shape = 'u8[1024]{0}', space=vmem, size = 0x400, scoped, tag = 'output window, operand 0, single buffered']
    #allocation3 [shape = 's32[1]{0}', space=sflag, size = 0x4, scoped, tag = 'scoped memory for gcn_forward.23']
    %12 = vsyncpa [#allocation3], 0
    // Predicated region
    $region2: #{gcn_forward.23} parent=1 // pred_check
      _
    $region3: #{gcn_forward.23} parent=1 // pred_check_branch
      %14 = sbr.rel (0) target = $region5
    $region4: #{gcn_forward.23} parent=1 // pred_region
      _
    $region5: #{gcn_forward.23} parent=1 // pred_fallthru
      _
    // Predicated region
    $region6: #{gcn_forward.23} parent=1 // pred_check
      _
    $region7: #{gcn_forward.23} parent=1 // pred_check_branch
      %16 = sbr.rel (0) target = $region9
    $region8: #{gcn_forward.23} parent=1 // pred_region
      _
    $region9: #{gcn_forward.23} parent=1 // pred_fallthru
      _
    // Predicated region
    $region10: #{gcn_forward.23} parent=1 // pred_check
      _
    $region11: #{gcn_forward.23} parent=1 // pred_check_branch
      %18 = sbr.rel (0) target = $region13
    $region12: #{gcn_forward.23} parent=1 // pred_region
      _
    $region13: #{gcn_forward.23} parent=1 // pred_fallthru
      _
    // Predicated region
    $region14: #{gcn_forward.23} parent=1 // pred_check
      _
    $region15: #{gcn_forward.23} parent=1 // pred_check_branch
      %20 = sbr.rel (0) target = $region17
    $region16: #{gcn_forward.23} parent=1 // pred_region
      _
    $region17: #{gcn_forward.23} parent=1 // pred_fallthru
      _
    // Predicated region
    $region18: #{gcn_forward.23} parent=1 // pred_check
      _
    $region19: #{gcn_forward.23} parent=1 // pred_check_branch
      %22 = sbr.rel (0) target = $region21
    $region20: #{gcn_forward.23} parent=1 // pred_region
      _
    $region21: #{gcn_forward.23} parent=1 // pred_fallthru
      _
    // Predicated region
    $region22: #{gcn_forward.23} parent=1 // pred_check
      _
    $region23: #{gcn_forward.23} parent=1 // pred_check_branch
      %24 = sbr.rel (0) target = $region25
    $region24: #{gcn_forward.23} parent=1 // pred_region
      _
    $region25: #{gcn_forward.23} parent=1 // pred_fallthru
      _
    // Predicated region
    $region26: #{gcn_forward.23} parent=1 // pred_check
      _
    $region27: #{gcn_forward.23} parent=1 // pred_check_branch
      %26 = sbr.rel (0) target = $region29
    $region28: #{gcn_forward.23} parent=1 // pred_region
      _
    $region29: #{gcn_forward.23} parent=1 // pred_fallthru
      _
    %v27 = vld [vmem:[%s0] sm:$0x3]
    %v28 = vld [vmem:[%s1] sm:$0xff]
    %v29 = vld [vmem:[%s1 + $0x8] sm:$0xff]
    %v30 = vld [vmem:[%s1 + $0x10] sm:$0xff]
    %v31 = vld [vmem:[%s1 + $0x18] sm:$0xff]
    %v32 = vld [vmem:[%s1 + $0x20] sm:$0xff]
    %v33 = vld [vmem:[%s1 + $0x28] sm:$0xff]
    %v34 = vld [vmem:[%s1 + $0x30] sm:$0xff]
    %v35 = vld [vmem:[%s1 + $0x38] sm:$0xff]
    %v36 = vld [vmem:[%s1 + $0x40] sm:$0xff]
    %v37 = vld [vmem:[%s1 + $0x48] sm:$0xff]
    %v38 = vld [vmem:[%s1 + $0x50] sm:$0xff]
    %v39 = vld [vmem:[%s1 + $0x58] sm:$0xff]
    %v40 = vld [vmem:[%s1 + $0x60] sm:$0xff]
    %v41 = vld [vmem:[%s1 + $0x68] sm:$0xff]
    %v42 = vld [vmem:[%s1 + $0x70] sm:$0xff]
    %v43 = vld [vmem:[%s1 + $0x78] sm:$0xff]
    %v44 = vld [vmem:[%s2] sm:$0x1]
    %v46 = vperm.slane %v44, 0
    %48 = vmatpush.msra.mxu0 %v43
    %49 = vmatpush.msra.mxu0 %v42
    %50 = vmatpush.msra.mxu0 %v41
    %51 = vmatpush.msra.mxu0 %v40
    %52 = vmatpush.msra.mxu0 %v39
    %53 = vmatpush.msra.mxu0 %v38
    %54 = vmatpush.msra.mxu0 %v37
    %55 = vmatpush.msra.mxu0 %v36
    %56 = vmatpush.msra.mxu0 %v35
    %57 = vmatpush.msra.mxu0 %v34
    %58 = vmatpush.msra.mxu0 %v33
    %59 = vmatpush.msra.mxu0 %v32
    %60 = vmatpush.msra.mxu0 %v31
    %61 = vmatpush.msra.mxu0 %v30
    %62 = vmatpush.msra.mxu0 %v29
    %63 = vmatpush.msra.mxu0 %v28
    %64 = vmatmul.f32.gmra.mxu0 %v27
    %v65 = vpop.f32.mrf.mxu0
    %v66 = vadd.f32 %v46, %v65
    %67 = vdwg.mxu0
    %v68 = vmax.f32 %v66, 0.0
    %v69 = vld [vmem:[%s3] sm:$0xff]
    %v70 = vld [vmem:[%s3 + $0x8] sm:$0xff]
    %v71 = vld [vmem:[%s3 + $0x10] sm:$0xff]
    %v72 = vld [vmem:[%s3 + $0x18] sm:$0xff]
    %v73 = vld [vmem:[%s3 + $0x20] sm:$0xff]
    %v74 = vld [vmem:[%s3 + $0x28] sm:$0xff]
    %v75 = vld [vmem:[%s3 + $0x30] sm:$0xff]
    %v76 = vld [vmem:[%s3 + $0x38] sm:$0xff]
    %v77 = vld [vmem:[%s4] sm:$0x1]
    %v79 = vperm.slane %v77, 0
    %vm81 = vcmask 523264
    %v83 = vsel %vm81, %v68, 0
    %85 = vmatpush.msra.mxu0 0.0
    %86 = vmatpush.msra.mxu0 0.0
    %87 = vmatpush.msra.mxu0 0.0
    %88 = vmatpush.msra.mxu0 0.0
    %89 = vmatpush.msra.mxu0 0.0
    %90 = vmatpush.msra.mxu0 0.0
    %91 = vmatpush.msra.mxu0 0.0
    %92 = vmatpush.msra.mxu0 0.0
    %93 = vmatpush.msra.mxu0 %v76
    %94 = vmatpush.msra.mxu0 %v75
    %95 = vmatpush.msra.mxu0 %v74
    %96 = vmatpush.msra.mxu0 %v73
    %97 = vmatpush.msra.mxu0 %v72
    %98 = vmatpush.msra.mxu0 %v71
    %99 = vmatpush.msra.mxu0 %v70
    %100 = vmatpush.msra.mxu0 %v69
    %101 = vmatmul.f32.gmra.mxu0 %v83
    %v102 = vpop.f32.mrf.mxu0
    %v103 = vadd.f32 %v79, %v102
    %104 = vdwg.mxu0
    %v105 = vmax.f32 %v103, 0.0
    %v106 = vld [vmem:[%s5] sm:$0xff]
    %v107 = vld [vmem:[%s5 + $0x8] sm:$0xff]
    %v108 = vld [vmem:[%s6] sm:$0x1]
    %v110 = vperm.slane %v108, 0
    %vm112 = vcmask 130048
    %v114 = vsel %vm112, %v105, 0
    %116 = vmatpush.msra.mxu0 0.0
    %117 = vmatpush.msra.mxu0 0.0
    %118 = vmatpush.msra.mxu0 0.0
    %119 = vmatpush.msra.mxu0 0.0
    %120 = vmatpush.msra.mxu0 0.0
    %121 = vmatpush.msra.mxu0 0.0
    %122 = vmatpush.msra.mxu0 0.0
    %123 = vmatpush.msra.mxu0 0.0
    %124 = vmatpush.msra.mxu0 0.0
    %125 = vmatpush.msra.mxu0 0.0
    %126 = vmatpush.msra.mxu0 0.0
    %127 = vmatpush.msra.mxu0 0.0
    %128 = vmatpush.msra.mxu0 0.0
    %129 = vmatpush.msra.mxu0 0.0
    %130 = vmatpush.msra.mxu0 %v107
    %131 = vmatpush.msra.mxu0 %v106
    %132 = vmatmul.f32.gmra.mxu0 %v114
    %v133 = vpop.f32.mrf.mxu0
    %v134 = vadd.f32 %v110, %v133
    %135 = vdwg.mxu0
    %vm136 = vcmask 9216
    %137 = vst.msk [vmem:[#allocation2] sm:$0x3] %vm136, %v134
    // Predicated region
    $region30: #{gcn_forward.23} parent=1 // pred_check
      _
    $region31: #{gcn_forward.23} parent=1 // pred_check_branch
      %139 = sbr.rel (0) target = $region33
    $region32: #{gcn_forward.23} parent=1 // pred_region
      %141 = vsyncadd [#allocation3], 0
      %s143 = sshll.u32 [#allocation2], 4
      %s144 = int_to_ptr.vmem [resolvable:$true] %s143
      %s145 = sshll.u32 %s7, 4
      %s146 = int_to_ptr.hbm [resolvable:$true] %s145
      %148 = dma.vmem_to_hbm [thread:$0]  %s144, 32, %s146, [#allocation3]
    $region33: #{gcn_forward.23} parent=1 // pred_fallthru
      _
    // Predicated region
    $region34: #{gcn_forward.23} parent=1 // pred_check
      _
    $region35: #{gcn_forward.23} parent=1 // pred_check_branch
      %150 = sbr.rel (0) target = $region37
    $region36: #{gcn_forward.23} parent=1 // pred_region
      %152 = dma.done [#allocation3], 32
    $region37: #{gcn_forward.23} parent=1 // pred_fallthru
      _
    %153 = vsyncpa [#allocation3], 1

// kernel: gcn_forward.22
$region0: #{gcn_forward.22}
  #allocation0 [shape = 'u32[]', space=smem, size = 0x4, offset = 0x4, fixed_abs, tag = 'smem constant byte address 0x4 - core index']
  #allocation1 [shape = 'u32[72,128]{1,0:T(1,128)}', space=vmem, size = 0x9000, scoped, tag = 'internal scratch']
  %s0 = inlined_call_operand.vmem [shape: s32[128,1], index: 0, kind: input, shape index: {}]
  %s1 = inlined_call_operand.vmem [shape: bf16[128,128], index: 1, kind: input, shape index: {}]
  %s2 = inlined_call_operand.vmem [shape: f32[8,128], index: 2, kind: output, shape index: {}]
  %s3 = sld [smem:[#allocation0]]
  $region22: #{gcn_forward.22} parent=0
    _
  %s5 = ssub.s32 1, %s3
  %s6 = scalar_select 0, %s5, %s3
  // Predicated region
  $region2: #{gcn_forward.22} parent=0 // pred_check
    _
  $region3: #{gcn_forward.22} parent=0 // pred_check_branch
    %8 = sbr.rel (0) target = $region5
  $region4: #{gcn_forward.22} parent=0 // pred_region
    _
  $region5: #{gcn_forward.22} parent=0 // pred_fallthru
    _
  // Predicated region
  $region6: #{gcn_forward.22} parent=0 // pred_check
    _
  $region7: #{gcn_forward.22} parent=0 // pred_check_branch
    %10 = sbr.rel (0) target = $region9
  $region8: #{gcn_forward.22} parent=0 // pred_region
    _
  $region9: #{gcn_forward.22} parent=0 // pred_fallthru
    _
  %p11 = scmp.eq.s32.totalorder 0, 0
  // Predicated region
  $region10: #{gcn_forward.22} parent=0 // pred_check
    %p12 = pneg %p11
  $region11: #{gcn_forward.22} parent=0 // pred_check_branch
    %14 = sbr.rel (%p12) target = $region13
  $region12: #{gcn_forward.22} parent=0 // pred_region
    %15 = vst [vmem:[%s2] sm:$0xff] -3e+38
  $region13: #{gcn_forward.22} parent=0 // pred_fallthru
    _
  %v16 = vld [vmem:[%s1] sm:$0xf]
  %v17 = vld [vmem:[%s1 + $0x4] sm:$0xf]
  %v18 = vld [vmem:[%s1 + $0x8] sm:$0xf]
  %v19 = vld [vmem:[%s1 + $0xc] sm:$0xf]
  %v20 = vld [vmem:[%s1 + $0x10] sm:$0xf]
  %v21 = vld [vmem:[%s1 + $0x14] sm:$0xf]
  %v22 = vld [vmem:[%s1 + $0x18] sm:$0xf]
  %v23 = vld [vmem:[%s1 + $0x1c] sm:$0xf]
  %v24 = vld [vmem:[%s1 + $0x20] sm:$0xf]
  %v25 = vld [vmem:[%s1 + $0x24] sm:$0xf]
  %v26 = vld [vmem:[%s1 + $0x28] sm:$0xf]
  %v27 = vld [vmem:[%s1 + $0x2c] sm:$0xf]
  %v28 = vld [vmem:[%s1 + $0x30] sm:$0xf]
  %v29 = vld [vmem:[%s1 + $0x34] sm:$0xf]
  %v30 = vld [vmem:[%s1 + $0x38] sm:$0xf]
  %v31 = vld [vmem:[%s1 + $0x3c] sm:$0xf]
  %v32 = vunpack.c.l.bf16 %v16
  %v33 = vunpack.c.l.bf16 %v17
  %v34 = vunpack.c.l.bf16 %v18
  %v35 = vunpack.c.l.bf16 %v19
  %v36 = vunpack.c.l.bf16 %v20
  %v37 = vunpack.c.l.bf16 %v21
  %v38 = vunpack.c.l.bf16 %v22
  %v39 = vunpack.c.l.bf16 %v23
  %v40 = vunpack.c.l.bf16 %v24
  %v41 = vunpack.c.l.bf16 %v25
  %v42 = vunpack.c.l.bf16 %v26
  %v43 = vunpack.c.l.bf16 %v27
  %v44 = vunpack.c.l.bf16 %v28
  %v45 = vunpack.c.l.bf16 %v29
  %v46 = vunpack.c.l.bf16 %v30
  %v47 = vunpack.c.l.bf16 %v31
  %v48 = vld [vmem:[%s0] sm:$0xff]
  %v49 = vld [vmem:[%s0 + $0x8] sm:$0xff]
  %v50 = vld [vmem:[%s0 + $0x10] sm:$0xff]
  %v51 = vld [vmem:[%s0 + $0x18] sm:$0xff]
  %v52 = vld [vmem:[%s0 + $0x20] sm:$0xff]
  %v53 = vld [vmem:[%s0 + $0x28] sm:$0xff]
  %v54 = vld [vmem:[%s0 + $0x30] sm:$0xff]
  %v55 = vld [vmem:[%s0 + $0x38] sm:$0xff]
  %v56 = vld [vmem:[%s0 + $0x40] sm:$0xff]
  %v57 = vld [vmem:[%s0 + $0x48] sm:$0xff]
  %v58 = vld [vmem:[%s0 + $0x50] sm:$0xff]
  %v59 = vld [vmem:[%s0 + $0x58] sm:$0xff]
  %v60 = vld [vmem:[%s0 + $0x60] sm:$0xff]
  %v61 = vld [vmem:[%s0 + $0x68] sm:$0xff]
  %v62 = vld [vmem:[%s0 + $0x70] sm:$0xff]
  %v63 = vld [vmem:[%s0 + $0x78] sm:$0xff]
  %vm64 = vcmp.eq.s32.totalorder %v48, 0
  %vm65 = vcmp.eq.s32.totalorder %v49, 0
  %vm66 = vcmp.eq.s32.totalorder %v50, 0
  %vm67 = vcmp.eq.s32.totalorder %v51, 0
  %vm68 = vcmp.eq.s32.totalorder %v52, 0
  %vm69 = vcmp.eq.s32.totalorder %v53, 0
  %vm70 = vcmp.eq.s32.totalorder %v54, 0
  %vm71 = vcmp.eq.s32.totalorder %v55, 0
  %vm72 = vcmp.eq.s32.totalorder %v56, 0
  %vm73 = vcmp.eq.s32.totalorder %v57, 0
  %vm74 = vcmp.eq.s32.totalorder %v58, 0
  %vm75 = vcmp.eq.s32.totalorder %v59, 0
  %vm76 = vcmp.eq.s32.totalorder %v60, 0
  %vm77 = vcmp.eq.s32.totalorder %v61, 0
  %vm78 = vcmp.eq.s32.totalorder %v62, 0
  %vm79 = vcmp.eq.s32.totalorder %v63, 0
  %v80 = vsel %vm64, 1, 0
  %v81 = vsel %vm65, 1, 0
  %v82 = vsel %vm66, 1, 0
  %v83 = vsel %vm67, 1, 0
  %v84 = vsel %vm68, 1, 0
  %v85 = vsel %vm69, 1, 0
  %v86 = vsel %vm70, 1, 0
  %v87 = vsel %vm71, 1, 0
  %v88 = vsel %vm72, 1, 0
  %v89 = vsel %vm73, 1, 0
  %v90 = vsel %vm74, 1, 0
  %v91 = vsel %vm75, 1, 0
  %v92 = vsel %vm76, 1, 0
  %v93 = vsel %vm77, 1, 0
  %v94 = vsel %vm78, 1, 0
  %v95 = vsel %vm79, 1, 0
  %96 = vset.pattern.permute.xlu0 0
  %97 = vperm.xlu0 %96, %v80
  %v98 = vpop.permute.xlu0 %97
  %99 = vset.pattern.permute.xlu0 0
  %100 = vperm.xlu0 %99, %v81
  %v101 = vpop.permute.xlu0 %100
  %102 = vset.pattern.permute.xlu0 0
  %103 = vperm.xlu0 %102, %v82
  %v104 = vpop.permute.xlu0 %103
  %105 = vset.pattern.permute.xlu0 0
  %106 = vperm.xlu0 %105, %v83
  %v107 = vpop.permute.xlu0 %106
  %108 = vset.pattern.permute.xlu0 0
  %109 = vperm.xlu0 %108, %v84
  %v110 = vpop.permute.xlu0 %109
  %111 = vset.pattern.permute.xlu0 0
  %112 = vperm.xlu0 %111, %v85
  %v113 = vpop.permute.xlu0 %112
  %114 = vset.pattern.permute.xlu0 0
  %115 = vperm.xlu0 %114, %v86
  %v116 = vpop.permute.xlu0 %115
  %117 = vset.pattern.permute.xlu0 0
  %118 = vperm.xlu0 %117, %v87
  %v119 = vpop.permute.xlu0 %118
  %120 = vset.pattern.permute.xlu0 0
  %121 = vperm.xlu0 %120, %v88
  %v122 = vpop.permute.xlu0 %121
  %123 = vset.pattern.permute.xlu0 0
  %124 = vperm.xlu0 %123, %v89
  %v125 = vpop.permute.xlu0 %124
  %126 = vset.pattern.permute.xlu0 0
  %127 = vperm.xlu0 %126, %v90
  %v128 = vpop.permute.xlu0 %127
  %129 = vset.pattern.permute.xlu0 0
  %130 = vperm.xlu0 %129, %v91
  %v131 = vpop.permute.xlu0 %130
  %132 = vset.pattern.permute.xlu0 0
  %133 = vperm.xlu0 %132, %v92
  %v134 = vpop.permute.xlu0 %133
  %135 = vset.pattern.permute.xlu0 0
  %136 = vperm.xlu0 %135, %v93
  %v137 = vpop.permute.xlu0 %136
  %138 = vset.pattern.permute.xlu0 0
  %139 = vperm.xlu0 %138, %v94
  %v140 = vpop.permute.xlu0 %139
  %141 = vset.pattern.permute.xlu0 0
  %142 = vperm.xlu0 %141, %v95
  %v143 = vpop.permute.xlu0 %142
  %vm144 = vcmp.eq.s32.totalorder %v98, 1
  %vm145 = vcmp.eq.s32.totalorder %v101, 1
  %vm146 = vcmp.eq.s32.totalorder %v104, 1
  %vm147 = vcmp.eq.s32.totalorder %v107, 1
  %vm148 = vcmp.eq.s32.totalorder %v110, 1
  %vm149 = vcmp.eq.s32.totalorder %v113, 1
  %vm150 = vcmp.eq.s32.totalorder %v116, 1
  %vm151 = vcmp.eq.s32.totalorder %v119, 1
  %vm152 = vcmp.eq.s32.totalorder %v122, 1
  %vm153 = vcmp.eq.s32.totalorder %v125, 1
  %vm154 = vcmp.eq.s32.totalorder %v128, 1
  %vm155 = vcmp.eq.s32.totalorder %v131, 1
  %vm156 = vcmp.eq.s32.totalorder %v134, 1
  %vm157 = vcmp.eq.s32.totalorder %v137, 1
  %vm158 = vcmp.eq.s32.totalorder %v140, 1
  %vm159 = vcmp.eq.s32.totalorder %v143, 1
  %v160 = vsel %vm144, %v32, -3e+38
  %v161 = vsel %vm145, %v33, -3e+38
  %v162 = vsel %vm146, %v34, -3e+38
  %v163 = vsel %vm147, %v35, -3e+38
  %v164 = vsel %vm148, %v36, -3e+38
  %v165 = vsel %vm149, %v37, -3e+38
  %v166 = vsel %vm150, %v38, -3e+38
  %v167 = vsel %vm151, %v39, -3e+38
  %v168 = vsel %vm152, %v40, -3e+38
  %v169 = vsel %vm153, %v41, -3e+38
  %v170 = vsel %vm154, %v42, -3e+38
  %v171 = vsel %vm155, %v43, -3e+38
  %v172 = vsel %vm156, %v44, -3e+38
  %v173 = vsel %vm157, %v45, -3e+38
  %v174 = vsel %vm158, %v46, -3e+38
  %v175 = vsel %vm159, %v47, -3e+38
  %v176 = vmax.f32 %v160, %v164
  %v177 = vmax.f32 %v161, %v165
  %v178 = vmax.f32 %v162, %v166
  %v179 = vmax.f32 %v163, %v167
  %v180 = vmax.f32 %v176, %v168
  %v181 = vmax.f32 %v177, %v169
  %v182 = vmax.f32 %v178, %v170
  %v183 = vmax.f32 %v179, %v171
  %v184 = vmax.f32 %v180, %v172
  %v185 = vmax.f32 %v181, %v173
  %v186 = vmax.f32 %v182, %v174
  %v187 = vmax.f32 %v183, %v175
  %v188 = vmax.f32 %v184, %v185
  %v189 = vmax.f32 %v186, %v187
  %v190 = vmax.f32 %v188, %v189
  %v191 = vrot.slane %v190, 4
  %v192 = vmax.f32 %v190, %v191
  %v193 = vrot.slane %v192, 2
  %v194 = vmax.f32 %v192, %v193
  %v195 = vrot.slane %v194, 1
  %v196 = vmax.f32 %v194, %v195
  %vm197 = vcmp.eq.s32.totalorder %v48, 1
  %vm198 = vcmp.eq.s32.totalorder %v49, 1
  %vm199 = vcmp.eq.s32.totalorder %v50, 1
  %vm200 = vcmp.eq.s32.totalorder %v51, 1
  %vm201 = vcmp.eq.s32.totalorder %v52, 1
  %vm202 = vcmp.eq.s32.totalorder %v53, 1
  %vm203 = vcmp.eq.s32.totalorder %v54, 1
  %vm204 = vcmp.eq.s32.totalorder %v55, 1
  %vm205 = vcmp.eq.s32.totalorder %v56, 1
  %vm206 = vcmp.eq.s32.totalorder %v57, 1
  %vm207 = vcmp.eq.s32.totalorder %v58, 1
  %vm208 = vcmp.eq.s32.totalorder %v59, 1
  %vm209 = vcmp.eq.s32.totalorder %v60, 1
  %vm210 = vcmp.eq.s32.totalorder %v61, 1
  %vm211 = vcmp.eq.s32.totalorder %v62, 1
  %vm212 = vcmp.eq.s32.totalorder %v63, 1
  %v213 = vsel %vm197, 1, 0
  %v214 = vsel %vm198, 1, 0
  %v215 = vsel %vm199, 1, 0
  %v216 = vsel %vm200, 1, 0
  %v217 = vsel %vm201, 1, 0
  %v218 = vsel %vm202, 1, 0
  %v219 = vsel %vm203, 1, 0
  %v220 = vsel %vm204, 1, 0
  %v221 = vsel %vm205, 1, 0
  %v222 = vsel %vm206, 1, 0
  %v223 = vsel %vm207, 1, 0
  %v224 = vsel %vm208, 1, 0
  %v225 = vsel %vm209, 1, 0
  %v226 = vsel %vm210, 1, 0
  %v227 = vsel %vm211, 1, 0
  %v228 = vsel %vm212, 1, 0
  %229 = vset.pattern.permute.xlu0 0
  %230 = vperm.xlu0 %229, %v213
  %v231 = vpop.permute.xlu0 %230
  %232 = vset.pattern.permute.xlu0 0
  %233 = vperm.xlu0 %232, %v214
  %v234 = vpop.permute.xlu0 %233
  %235 = vset.pattern.permute.xlu0 0
  %236 = vperm.xlu0 %235, %v215
  %v237 = vpop.permute.xlu0 %236
  %238 = vset.pattern.permute.xlu0 0
  %239 = vperm.xlu0 %238, %v216
  %v240 = vpop.permute.xlu0 %239
  %241 = vset.pattern.permute.xlu0 0
  %242 = vperm.xlu0 %241, %v217
  %v243 = vpop.permute.xlu0 %242
  %244 = vset.pattern.permute.xlu0 0
  %245 = vperm.xlu0 %244, %v218
  %v246 = vpop.permute.xlu0 %245
  %247 = vset.pattern.permute.xlu0 0
  %248 = vperm.xlu0 %247, %v219
  %v249 = vpop.permute.xlu0 %248
  %250 = vset.pattern.permute.xlu0 0
  %251 = vperm.xlu0 %250, %v220
  %v252 = vpop.permute.xlu0 %251
  %253 = vset.pattern.permute.xlu0 0
  %254 = vperm.xlu0 %253, %v221
  %v255 = vpop.permute.xlu0 %254
  %256 = vset.pattern.permute.xlu0 0
  %257 = vperm.xlu0 %256, %v222
  %v258 = vpop.permute.xlu0 %257
  %259 = vset.pattern.permute.xlu0 0
  %260 = vperm.xlu0 %259, %v223
  %v261 = vpop.permute.xlu0 %260
  %262 = vset.pattern.permute.xlu0 0
  %263 = vperm.xlu0 %262, %v224
  %v264 = vpop.permute.xlu0 %263
  %265 = vset.pattern.permute.xlu0 0
  %266 = vperm.xlu0 %265, %v225
  %v267 = vpop.permute.xlu0 %266
  %268 = vset.pattern.permute.xlu0 0
  %269 = vperm.xlu0 %268, %v226
  %v270 = vpop.permute.xlu0 %269
  %271 = vset.pattern.permute.xlu0 0
  %272 = vperm.xlu0 %271, %v227
  %v273 = vpop.permute.xlu0 %272
  %274 = vset.pattern.permute.xlu0 0
  %275 = vperm.xlu0 %274, %v228
  %v276 = vpop.permute.xlu0 %275
  %vm277 = vcmp.eq.s32.totalorder %v231, 1
  %vm278 = vcmp.eq.s32.totalorder %v234, 1
  %vm279 = vcmp.eq.s32.totalorder %v237, 1
  %vm280 = vcmp.eq.s32.totalorder %v240, 1
  %vm281 = vcmp.eq.s32.totalorder %v243, 1
  %vm282 = vcmp.eq.s32.totalorder %v246, 1
  %vm283 = vcmp.eq.s32.totalorder %v249, 1
  %vm284 = vcmp.eq.s32.totalorder %v252, 1
  %vm285 = vcmp.eq.s32.totalorder %v255, 1
  %vm286 = vcmp.eq.s32.totalorder %v258, 1
  %vm287 = vcmp.eq.s32.totalorder %v261, 1
  %vm288 = vcmp.eq.s32.totalorder %v264, 1
  %vm289 = vcmp.eq.s32.totalorder %v267, 1
  %vm290 = vcmp.eq.s32.totalorder %v270, 1
  %vm291 = vcmp.eq.s32.totalorder %v273, 1
  %vm292 = vcmp.eq.s32.totalorder %v276, 1
  %v293 = vsel %vm277, %v32, -3e+38
  %v294 = vsel %vm278, %v33, -3e+38
  %v295 = vsel %vm279, %v34, -3e+38
  %v296 = vsel %vm280, %v35, -3e+38
  %v297 = vsel %vm281, %v36, -3e+38
  %v298 = vsel %vm282, %v37, -3e+38
  %v299 = vsel %vm283, %v38, -3e+38
  %v300 = vsel %vm284, %v39, -3e+38
  %v301 = vsel %vm285, %v40, -3e+38
  %v302 = vsel %vm286, %v41, -3e+38
  %v303 = vsel %vm287, %v42, -3e+38
  %v304 = vsel %vm288, %v43, -3e+38
  %v305 = vsel %vm289, %v44, -3e+38
  %v306 = vsel %vm290, %v45, -3e+38
  %v307 = vsel %vm291, %v46, -3e+38
  %v308 = vsel %vm292, %v47, -3e+38
  %v309 = vmax.f32 %v293, %v297
  %v310 = vmax.f32 %v294, %v298
  %v311 = vmax.f32 %v295, %v299
  %v312 = vmax.f32 %v296, %v300
  %v313 = vmax.f32 %v309, %v301
  %v314 = vmax.f32 %v310, %v302
  %v315 = vmax.f32 %v311, %v303
  %v316 = vmax.f32 %v312, %v304
  %v317 = vmax.f32 %v313, %v305
  %v318 = vmax.f32 %v314, %v306
  %v319 = vmax.f32 %v315, %v307
  %v320 = vmax.f32 %v316, %v308
  %v321 = vmax.f32 %v317, %v318
  %v322 = vmax.f32 %v319, %v320
  %v323 = vmax.f32 %v321, %v322
  %v324 = vrot.slane %v323, 4
  %v325 = vmax.f32 %v323, %v324
  %v326 = vrot.slane %v325, 2
  %v327 = vmax.f32 %v325, %v326
  %v328 = vrot.slane %v327, 1
  %v329 = vmax.f32 %v327, %v328
  %vm330 = vcmask 1040384
  %v331 = vsel %vm330, %v196, %v329
  %vm332 = vcmask 1041408
  %v333 = vsel %vm332, %v331, -3e+38
  %v334 = vld [vmem:[%s2] sm:$0xff]
  %v335 = vmax.f32 %v334, %v333
  %336 = vst [vmem:[%s2] sm:$0xff] %v335
  // Predicated region
  $region14: #{gcn_forward.22} parent=0 // pred_check
    _
  $region15: #{gcn_forward.22} parent=0 // pred_check_branch
    %338 = sbr.rel (0) target = $region17
  $region16: #{gcn_forward.22} parent=0 // pred_region
    _
  $region17: #{gcn_forward.22} parent=0 // pred_fallthru
    _
  // Predicated region
  $region18: #{gcn_forward.22} parent=0 // pred_check
    _
  $region19: #{gcn_forward.22} parent=0 // pred_check_branch
    %340 = sbr.rel (0) target = $region21
  $region20: #{gcn_forward.22} parent=0 // pred_region
    _
  $region21: #{gcn_forward.22} parent=0 // pred_fallthru
    _

</llo_original>
